<compile_context>
chip_gen: v7x
topology: tpu7x:2x2x1
jax: 0.10.0
libtpu: 0.0.40
codegen_flags: <defaults>
</compile_context>

<pallas_src>
import functools

import jax
import jax.numpy as jnp
import numpy as np
from jax import lax
from jax.experimental import pallas as pl
from jax.experimental.pallas import tpu as pltpu

F_PAD = 128        # lane-dense width every feature dim is padded to
NEG_BIG = -1e30    # masks padded lanes before the final log-softmax


def _round_up(x, m):
    return ((x + m - 1) // m) * m


# ---------------------------------------------------------------------------
# Fused multi-layer GCN kernel
#   grid = (num_layers, num_row_tiles), both sequential.
#   Per layer (row tile 0): XW = H @ W_l computed once, cached bf16 in VMEM.
#   Per row tile:           z = A[rows] @ XW (f32 acc); z = z*scale + shift
#                           (bias folded into BN affine); ReLU for hidden
#                           layers (written back into the resident H scratch),
#                           masked log-softmax for the final layer.
# ---------------------------------------------------------------------------
def _fused_gcn_kernel(a_ref, x0_ref, w_ref, ss_ref, o_ref, h_scr, xw_scr,
                      *, num_layers, tm, out_valid, last_log_softmax):
    l = pl.program_id(0)
    i = pl.program_id(1)
    last = num_layers - 1

    # ---- once per layer: XW = H_cur @ W_l, cached in VMEM (bf16) -----------
    @pl.when(i == 0)
    def _():
        w = w_ref[0]                                       # (F_PAD, F_PAD) bf16

        @pl.when(l == 0)
        def _():
            xw_scr[...] = jnp.dot(
                x0_ref[...], w, preferred_element_type=jnp.float32
            ).astype(xw_scr.dtype)

        @pl.when(l != 0)
        def _():
            xw_scr[...] = jnp.dot(
                h_scr[...], w, preferred_element_type=jnp.float32
            ).astype(xw_scr.dtype)

    # ---- propagation for this row tile: A_tile @ XW, then folded affine ----
    z = jnp.dot(a_ref[...], xw_scr[...], preferred_element_type=jnp.float32)
    ss = ss_ref[...]                                       # (1, 2, F_PAD) f32
    z = z * ss[0, 0:1, :] + ss[0, 1:2, :]                  # bias + BN in one FMA

    # ---- hidden layers: ReLU, keep activations resident in VMEM ------------
    @pl.when(l != last)
    def _():
        act = jnp.maximum(z, 0.0)                          # dropout = identity (eval)
        r0 = pl.multiple_of(i * tm, tm)
        h_scr[pl.ds(r0, tm), :] = act.astype(h_scr.dtype)
        o_ref[...] = act        # defines the block; overwritten by final layer

    # ---- final layer: masked log-softmax (or raw embeddings) ---------------
    @pl.when(l == last)
    def _():
        if last_log_softmax:
            lane = lax.broadcasted_iota(jnp.int32, z.shape, 1)
            zm = jnp.where(lane < out_valid, z, NEG_BIG)   # mask padded lanes
            m = jnp.max(zm, axis=1, keepdims=True)
            s = zm - m
            lse = jnp.log(jnp.sum(jnp.exp(s), axis=1, keepdims=True))
            o_ref[...] = s - lse
        else:
            o_ref[...] = z      # return_embeds=True: raw GCNConv output


def gcn_forward(a_hat, x, w_stack, ss_stack, *, out_dim, num_nodes,
                last_log_softmax=True, tm=128):
    """a_hat:(n_pad,n_pad) bf16, x:(n_pad,F_PAD) bf16, w_stack:(L,F_PAD,F_PAD) bf16,
    ss_stack:(L,2,F_PAD) f32.  Returns (num_nodes, out_dim) f32."""
    n_pad = a_hat.shape[0]
    num_layers = w_stack.shape[0]
    tm = min(tm, n_pad)
    assert n_pad % tm == 0 and tm % 16 == 0
    n_tiles = n_pad // tm

    kernel = functools.partial(
        _fused_gcn_kernel, num_layers=num_layers, tm=tm,
        out_valid=out_dim, last_log_softmax=last_log_softmax)

    out = pl.pallas_call(
        kernel,
        out_shape=jax.ShapeDtypeStruct((n_pad, F_PAD), jnp.float32),
        grid=(num_layers, n_tiles),
        in_specs=[
            pl.BlockSpec((tm, n_pad), lambda l, i: (i, 0)),          # A row tile
            pl.BlockSpec((n_pad, F_PAD), lambda l, i: (0, 0)),       # X0 (resident)
            pl.BlockSpec((1, F_PAD, F_PAD), lambda l, i: (l, 0, 0)),  # W_l
            pl.BlockSpec((1, 2, F_PAD), lambda l, i: (l, 0, 0)),      # scale/shift_l
        ],
        out_specs=pl.BlockSpec((tm, F_PAD), lambda l, i: (i, 0)),
        scratch_shapes=[
            pltpu.VMEM((n_pad, F_PAD), jnp.bfloat16),   # H (layer activations)
            pltpu.VMEM((n_pad, F_PAD), jnp.bfloat16),   # cached XW for current layer
        ],
        compiler_params=pltpu.CompilerParams(
            # Both axes sequential: cross-layer dependence through VMEM scratch.
            dimension_semantics=("arbitrary", "arbitrary"),
            # Sized against v7x's 64 MiB physical VMEM (fits v5e/v6e too).
            vmem_limit_bytes=48 * 1024 * 1024),
    )(a_hat, x, w_stack, ss_stack)
    return out[:num_nodes, :out_dim]


# ---------------------------------------------------------------------------
# Plain-JAX glue: adjacency normalization, parameter prep, reference
# ---------------------------------------------------------------------------
def normalized_adjacency(edge_index, num_nodes, n_pad):
    """Dense D^-1/2 (A+I) D^-1/2 like PyG gcn_norm (scatter-ADD so duplicate
    edges accumulate), zero-padded to (n_pad, n_pad), stored bf16."""
    src, dst = edge_index[0], edge_index[1]
    a = jnp.zeros((num_nodes, num_nodes), jnp.float32)
    a = a.at[dst, src].add(1.0)                        # row = dst aggregates col = src
    a = a + jnp.eye(num_nodes, dtype=jnp.float32)      # self loops
    deg = jnp.sum(a, axis=1)
    dinv = jnp.where(deg > 0, lax.rsqrt(deg), 0.0)
    a = dinv[:, None] * a * dinv[None, :]
    ap = jnp.zeros((n_pad, n_pad), jnp.float32).at[:num_nodes, :num_nodes].set(a)
    return ap.astype(jnp.bfloat16)


def pad_features(x, n_pad):
    n, f = x.shape
    xp = jnp.zeros((n_pad, F_PAD), jnp.float32).at[:n, :f].set(x)
    return xp.astype(jnp.bfloat16)


def prepare_params(key, input_dim, hidden_dim, output_dim, num_layers):
    """GCNConv glorot weights + bias, BatchNorm1d (eval) folded into one affine
    per layer (scale, shift) with the conv bias absorbed; padded lane-dense."""
    dims = [input_dim] + [hidden_dim] * (num_layers - 1) + [output_dim]
    eps = 1e-5
    w_stack = np.zeros((num_layers, F_PAD, F_PAD), np.float32)
    ss_stack = np.zeros((num_layers, 2, F_PAD), np.float32)
    for i in range(num_layers):
        key, kw, kb, kg, kbeta, km, kv = jax.random.split(key, 7)
        fin, fout = dims[i], dims[i + 1]
        lim = float(np.sqrt(6.0 / (fin + fout)))                      # glorot
        w = jax.random.uniform(kw, (fin, fout), jnp.float32, -lim, lim)
        b = 0.1 * jax.random.normal(kb, (fout,), jnp.float32)
        w_stack[i, :fin, :fout] = np.asarray(w)
        if i < num_layers - 1:                                        # eval-mode BN
            gamma = 1.0 + 0.1 * jax.random.normal(kg, (fout,), jnp.float32)
            beta = 0.1 * jax.random.normal(kbeta, (fout,), jnp.float32)
            rmean = 0.1 * jax.random.normal(km, (fout,), jnp.float32)
            rvar = jax.random.uniform(kv, (fout,), jnp.float32, 0.5, 1.5)
            scale = gamma / jnp.sqrt(rvar + eps)
            shift = beta - rmean * scale + b * scale                  # bias folded
        else:
            scale = jnp.ones((fout,), jnp.float32)
            shift = b
        ss_stack[i, 0, :fout] = np.asarray(scale)
        ss_stack[i, 1, :fout] = np.asarray(shift)
    return (jnp.asarray(w_stack, jnp.bfloat16), jnp.asarray(ss_stack, jnp.float32))


def gcn_reference(a_hat, x, w_stack, ss_stack, *, out_dim, num_nodes,
                  last_log_softmax=True):
    """Pure-jnp mirror of the kernel math (same bf16 casts) for validation."""
    num_layers = w_stack.shape[0]
    h = x
    out = None
    for l in range(num_layers):
        xw = jnp.dot(h, w_stack[l],
                     preferred_element_type=jnp.float32).astype(jnp.bfloat16)
        z = jnp.dot(a_hat, xw, preferred_element_type=jnp.float32)
        z = z * ss_stack[l, 0:1, :] + ss_stack[l, 1:2, :]
        if l < num_layers - 1:
            h = jnp.maximum(z, 0.0).astype(jnp.bfloat16)
        else:
            if last_log_softmax:
                lane = lax.broadcasted_iota(jnp.int32, z.shape, 1)
                zm = jnp.where(lane < out_dim, z, NEG_BIG)
                out = jax.nn.log_softmax(zm, axis=1)
            else:
                out = z
    return out[:num_nodes, :out_dim]


# ---------------------------------------------------------------------------
# Main
# ---------------------------------------------------------------------------
if __name__ == "__main__":
    key = jax.random.PRNGKey(0)

    num_nodes = 200                       # not a multiple of the row tile on purpose
    input_dim, hidden_dim, output_dim = 16, 32, 8
    num_layers = 3
    num_edges = 512
    tm = 128                              # row tile
    n_pad = _round_up(num_nodes, tm)      # 256 -> 2 row tiles x 3 layers grid

    key, kx, ks, kd = jax.random.split(key, 4)
    x_raw = jax.random.normal(kx, (num_nodes, input_dim), jnp.float32)

    # random undirected edge_index [2, 2E] (both directions, duplicates allowed)
    src = jax.random.randint(ks, (num_edges,), 0, num_nodes)
    dst = jax.random.randint(kd, (num_edges,), 0, num_nodes)
    edge_index = jnp.stack([jnp.concatenate([src, dst]),
                            jnp.concatenate([dst, src])], axis=0)

    a_hat = normalized_adjacency(edge_index, num_nodes, n_pad)
    x = pad_features(x_raw, n_pad)
    w_stack, ss_stack = prepare_params(key, input_dim, hidden_dim,
                                       output_dim, num_layers)

    out = gcn_forward(a_hat, x, w_stack, ss_stack,
                      out_dim=output_dim, num_nodes=num_nodes, tm=tm)
    out = jax.block_until_ready(out)

    ref = jax.block_until_ready(
        gcn_reference(a_hat, x, w_stack, ss_stack,
                      out_dim=output_dim, num_nodes=num_nodes))

    assert out.shape == (num_nodes, output_dim)
    np.testing.assert_allclose(np.asarray(out), np.asarray(ref),
                               rtol=5e-3, atol=5e-3)
    print("KERNEL_OK")
</pallas_src>

<mosaic_0001>
module attributes {stable_mosaic.version = 11 : i64} {
  func.func @_fused_gcn_kernel(%arg0: i32, %arg1: i32, %arg2: memref<128x256xbf16, #tpu.memory_space<vmem>>, %arg3: memref<256x128xbf16, #tpu.memory_space<vmem>>, %arg4: memref<1x128x128xbf16, #tpu.memory_space<vmem>>, %arg5: memref<1x2x128xf32, #tpu.memory_space<vmem>>, %arg6: memref<128x128xf32, #tpu.memory_space<vmem>>, %arg7: memref<256x128xbf16, #tpu.memory_space<vmem>>, %arg8: memref<256x128xbf16, #tpu.memory_space<vmem>>) attributes {dimension_semantics = [#tpu.dimension_semantics<arbitrary>, #tpu.dimension_semantics<arbitrary>], iteration_bounds = array<i64: 3, 2>, scalar_prefetch = 0 : i64, scratch_operands = 2 : i64, tpu.core_type = #tpu.core_type<tc>, window_params = [{transform_indices = @transform_0, window_bounds = array<i64: 128, 256>}, {pipeline_mode = #tpu.pipeline_mode<synchronous>, transform_indices = @transform_1, window_bounds = array<i64: 256, 128>}, {transform_indices = @transform_2, window_bounds = array<i64: 1, 128, 128>}, {transform_indices = @transform_3, window_bounds = array<i64: 1, 2, 128>}, {transform_indices = @transform_4, window_bounds = array<i64: 128, 128>}]} {
    %c0_i32 = arith.constant 0 : i32
    %0 = arith.cmpi eq, %arg1, %c0_i32 : i32
    %1 = arith.extui %0 : i1 to i32
    %c0_i32_0 = arith.constant 0 : i32
    %2 = arith.cmpi ne, %1, %c0_i32_0 : i32
    scf.if %2 {
      %c0_10 = arith.constant 0 : index
      %c0_11 = arith.constant 0 : index
      %c0_12 = arith.constant 0 : index
      %21 = vector.load %arg4[%c0_10, %c0_11, %c0_12] : memref<1x128x128xbf16, #tpu.memory_space<vmem>>, vector<1x128x128xbf16>
      %22 = vector.shape_cast %21 : vector<1x128x128xbf16> to vector<128x128xbf16>
      %c0_i32_13 = arith.constant 0 : i32
      %23 = arith.cmpi eq, %arg0, %c0_i32_13 : i32
      %24 = arith.extui %23 : i1 to i32
      %c0_i32_14 = arith.constant 0 : i32
      %25 = arith.cmpi ne, %24, %c0_i32_14 : i32
      scf.if %25 {
        %c0_17 = arith.constant 0 : index
        %c0_18 = arith.constant 0 : index
        %29 = vector.load %arg3[%c0_17, %c0_18] : memref<256x128xbf16, #tpu.memory_space<vmem>>, vector<256x128xbf16>
        %cst_19 = arith.constant dense<0.000000e+00> : vector<256x128xf32>
        %30 = tpu.matmul %29, %22, %cst_19 {dimension_numbers = #tpu.dot_dimension_numbers<[1], [0], [0], [1], [0, 0, 1, 1], [], []>} : vector<256x128xbf16>, vector<128x128xbf16>, vector<256x128xf32> -> vector<256x128xf32>
        %31 = arith.truncf %30 : vector<256x128xf32> to vector<256x128xbf16>
        %c0_20 = arith.constant 0 : index
        %c0_21 = arith.constant 0 : index
        %32 = vector.load %arg8[%c0_20, %c0_21] : memref<256x128xbf16, #tpu.memory_space<vmem>>, vector<256x128xbf16>
        tpu.vector_store %arg8[%c0_20, %c0_21], %31 {strides = array<i32>} : memref<256x128xbf16, #tpu.memory_space<vmem>>, vector<256x128xbf16>,
      } else {
      }
      %c0_i32_15 = arith.constant 0 : i32
      %26 = arith.cmpi ne, %arg0, %c0_i32_15 : i32
      %27 = arith.extui %26 : i1 to i32
      %c0_i32_16 = arith.constant 0 : i32
      %28 = arith.cmpi ne, %27, %c0_i32_16 : i32
      scf.if %28 {
        %c0_17 = arith.constant 0 : index
        %c0_18 = arith.constant 0 : index
        %29 = vector.load %arg7[%c0_17, %c0_18] : memref<256x128xbf16, #tpu.memory_space<vmem>>, vector<256x128xbf16>
        %cst_19 = arith.constant dense<0.000000e+00> : vector<256x128xf32>
        %30 = tpu.matmul %29, %22, %cst_19 {dimension_numbers = #tpu.dot_dimension_numbers<[1], [0], [0], [1], [0, 0, 1, 1], [], []>} : vector<256x128xbf16>, vector<128x128xbf16>, vector<256x128xf32> -> vector<256x128xf32>
        %31 = arith.truncf %30 : vector<256x128xf32> to vector<256x128xbf16>
        %c0_20 = arith.constant 0 : index
        %c0_21 = arith.constant 0 : index
        %32 = vector.load %arg8[%c0_20, %c0_21] : memref<256x128xbf16, #tpu.memory_space<vmem>>, vector<256x128xbf16>
        tpu.vector_store %arg8[%c0_20, %c0_21], %31 {strides = array<i32>} : memref<256x128xbf16, #tpu.memory_space<vmem>>, vector<256x128xbf16>,
      } else {
      }
    } else {
    }
    %c0 = arith.constant 0 : index
    %c0_1 = arith.constant 0 : index
    %3 = vector.load %arg2[%c0, %c0_1] : memref<128x256xbf16, #tpu.memory_space<vmem>>, vector<128x256xbf16>
    %c0_2 = arith.constant 0 : index
    %c0_3 = arith.constant 0 : index
    %4 = vector.load %arg8[%c0_2, %c0_3] : memref<256x128xbf16, #tpu.memory_space<vmem>>, vector<256x128xbf16>
    %cst = arith.constant dense<0.000000e+00> : vector<128x128xf32>
    %5 = tpu.matmul %3, %4, %cst {dimension_numbers = #tpu.dot_dimension_numbers<[1], [0], [0], [1], [0, 0, 1, 1], [], []>} : vector<128x256xbf16>, vector<256x128xbf16>, vector<128x128xf32> -> vector<128x128xf32>
    %c0_4 = arith.constant 0 : index
    %c0_5 = arith.constant 0 : index
    %c0_6 = arith.constant 0 : index
    %6 = vector.load %arg5[%c0_4, %c0_5, %c0_6] : memref<1x2x128xf32, #tpu.memory_space<vmem>>, vector<1x2x128xf32>
    %7 = vector.extract_strided_slice %6 {offsets = [0, 0, 0], sizes = [1, 1, 128], strides = [1, 1, 1]} : vector<1x2x128xf32> to vector<1x1x128xf32>
    %8 = vector.shape_cast %7 : vector<1x1x128xf32> to vector<1x128xf32>
    %9 = vector.broadcast %8 : vector<1x128xf32> to vector<128x128xf32>
    %10 = arith.mulf %5, %9 : vector<128x128xf32>
    %11 = vector.extract_strided_slice %6 {offsets = [0, 1, 0], sizes = [1, 1, 128], strides = [1, 1, 1]} : vector<1x2x128xf32> to vector<1x1x128xf32>
    %12 = vector.shape_cast %11 : vector<1x1x128xf32> to vector<1x128xf32>
    %13 = vector.broadcast %12 : vector<1x128xf32> to vector<128x128xf32>
    %14 = arith.addf %10, %13 : vector<128x128xf32>
    %c2_i32 = arith.constant 2 : i32
    %15 = arith.cmpi ne, %arg0, %c2_i32 : i32
    %16 = arith.extui %15 : i1 to i32
    %c0_i32_7 = arith.constant 0 : i32
    %17 = arith.cmpi ne, %16, %c0_i32_7 : i32
    scf.if %17 {
      %cst_10 = arith.constant 0.000000e+00 : f32
      %21 = vector.broadcast %cst_10 : f32 to vector<128x128xf32>
      %22 = arith.maximumf %14, %21 : vector<128x128xf32>
      %c128_i32 = arith.constant 128 : i32
      %23 = arith.muli %arg1, %c128_i32 : i32
      %24 = tpu.assume_multiple %23, 128 : i32
      %25 = arith.truncf %22 : vector<128x128xf32> to vector<128x128xbf16>
      %26 = arith.index_cast %24 : i32 to index
      %c0_11 = arith.constant 0 : index
      %27 = vector.load %arg7[%26, %c0_11] : memref<256x128xbf16, #tpu.memory_space<vmem>>, vector<128x128xbf16>
      tpu.vector_store %arg7[%26, %c0_11], %25 {strides = array<i32>} : memref<256x128xbf16, #tpu.memory_space<vmem>>, vector<128x128xbf16>,
      %c0_12 = arith.constant 0 : index
      %c0_13 = arith.constant 0 : index
      %28 = vector.load %arg6[%c0_12, %c0_13] : memref<128x128xf32, #tpu.memory_space<vmem>>, vector<128x128xf32>
      tpu.vector_store %arg6[%c0_12, %c0_13], %22 {strides = array<i32>} : memref<128x128xf32, #tpu.memory_space<vmem>>, vector<128x128xf32>,
    } else {
    }
    %c2_i32_8 = arith.constant 2 : i32
    %18 = arith.cmpi eq, %arg0, %c2_i32_8 : i32
    %19 = arith.extui %18 : i1 to i32
    %c0_i32_9 = arith.constant 0 : i32
    %20 = arith.cmpi ne, %19, %c0_i32_9 : i32
    scf.if %20 {
      %21 = tpu.iota {dimensions = array<i32: 1>} : vector<128x128xi32>
      %c8_i32 = arith.constant 8 : i32
      %22 = vector.broadcast %c8_i32 : i32 to vector<128x128xi32>
      %23 = arith.cmpi slt, %21, %22 : vector<128x128xi32>
      %cst_10 = arith.constant -1.000000e+30 : f32
      %24 = vector.broadcast %cst_10 : f32 to vector<128x128xf32>
      %25 = arith.select %23, %14, %24 : vector<128x128xi1>, vector<128x128xf32>
      %cst_11 = arith.constant dense<0xFF800000> : vector<128xf32>
      %26 = vector.multi_reduction <maximumf>, %25, %cst_11 [1] : vector<128x128xf32> to vector<128xf32>
      %27 = vector.shape_cast %26 : vector<128xf32> to vector<128x1xf32>
      %28 = vector.broadcast %27 : vector<128x1xf32> to vector<128x128xf32>
      %29 = arith.subf %25, %28 : vector<128x128xf32>
      %30 = math.exp %29 : vector<128x128xf32>
      %cst_12 = arith.constant dense<0.000000e+00> : vector<128xf32>
      %31 = vector.multi_reduction <add>, %30, %cst_12 [1] : vector<128x128xf32> to vector<128xf32>
      %32 = vector.shape_cast %31 : vector<128xf32> to vector<128x1xf32>
      %33 = math.log %32 : vector<128x1xf32>
      %34 = vector.broadcast %33 : vector<128x1xf32> to vector<128x128xf32>
      %35 = arith.subf %29, %34 : vector<128x128xf32>
      %c0_13 = arith.constant 0 : index
      %c0_14 = arith.constant 0 : index
      %36 = vector.load %arg6[%c0_13, %c0_14] : memref<128x128xf32, #tpu.memory_space<vmem>>, vector<128x128xf32>
      tpu.vector_store %arg6[%c0_13, %c0_14], %35 {strides = array<i32>} : memref<128x128xf32, #tpu.memory_space<vmem>>, vector<128x128xf32>,
    } else {
    }
    return
  }
  func.func @transform_0(%arg0: i32, %arg1: i32) -> (i32, i32) {
    %c0_i32 = arith.constant 0 : i32
    %c0_i32_0 = arith.constant 0 : i32
    return %arg1, %c0_i32 : i32, i32
  }
  func.func @transform_1(%arg0: i32, %arg1: i32) -> (i32, i32) {
    %c0_i32 = arith.constant 0 : i32
    %c0_i32_0 = arith.constant 0 : i32
    %c0_i32_1 = arith.constant 0 : i32
    return %c0_i32, %c0_i32_0 : i32, i32
  }
  func.func @transform_2(%arg0: i32, %arg1: i32) -> (i32, i32, i32) {
    %c0_i32 = arith.constant 0 : i32
    %c0_i32_0 = arith.constant 0 : i32
    %c0_i32_1 = arith.constant 0 : i32
    return %arg0, %c0_i32, %c0_i32_0 : i32, i32, i32
  }
  func.func @transform_3(%arg0: i32, %arg1: i32) -> (i32, i32, i32) {
    %c0_i32 = arith.constant 0 : i32
    %c0_i32_0 = arith.constant 0 : i32
    %c0_i32_1 = arith.constant 0 : i32
    return %arg0, %c0_i32, %c0_i32_0 : i32, i32, i32
  }
  func.func @transform_4(%arg0: i32, %arg1: i32) -> (i32, i32) {
    %c0_i32 = arith.constant 0 : i32
    %c0_i32_0 = arith.constant 0 : i32
    return %arg1, %c0_i32 : i32, i32
  }
}

</mosaic_0001>

<llo_original>
// kernel: tpu_custom_call.1
$region0: #{tpu_custom_call.1}
  #allocation0 [shape = 'u32[]', space=smem, size = 0x4, offset = 0x4, fixed_abs, tag = 'smem constant byte address 0x4 - core index']
  #allocation1 [shape = 'u32[144,128]{1,0:T(1,128)}', space=vmem, size = 0x12000, scoped, tag = 'internal scratch']
  #allocation2 [shape = 'bf16[256,128]{1,0:T(16,128)(2,1)}', space=vmem, size = 0x10000, scoped, tag = 'scratch operand']
  #allocation3 [shape = 'bf16[256,128]{1,0:T(16,128)(2,1)}', space=vmem, size = 0x10000, scoped, tag = 'scratch operand']
  %s0 = inlined_call_operand.hbm [shape: bf16[256,256], index: 0, kind: input, shape index: {}]
  %s1 = inlined_call_operand.hbm [shape: bf16[256,128], index: 1, kind: input, shape index: {}]
  %s2 = inlined_call_operand.hbm [shape: bf16[3,128,128], index: 2, kind: input, shape index: {}]
  %s3 = inlined_call_operand.vmem [shape: f32[3,2,128], index: 3, kind: input, shape index: {}]
  %s4 = inlined_call_operand.hbm [shape: f32[256,128], index: 4, kind: output, shape index: {}]
  %s5 = sld [smem:[#allocation0]]
  $region81: #{tpu_custom_call.1} parent=0
    _
  %s7 = ssub.s32 1, %s5
  %s8 = scalar_select 0, %s7, %s5
  $region1: #{tpu_custom_call.1} parent=0
    #allocation4 [shape = 'u8[131072]{0}', space=vmem, size = 0x20000, scoped, tag = 'input window, operand 0']
    #allocation5 [shape = 's32[2]{0}', space=sflag, size = 0x8, scoped, tag = 'scoped memory for tpu_custom_call.1']
    #allocation6 [shape = 's32[2]{0}', space=sflag, size = 0x8, scoped, tag = 'scoped memory for tpu_custom_call.1']
    #allocation7 [shape = 'u8[65536]{0}', space=vmem, size = 0x10000, scoped, tag = 'input window, operand 1, single buffered']
    #allocation8 [shape = 's32[1]{0}', space=sflag, size = 0x4, scoped, tag = 'scoped memory for tpu_custom_call.1']
    #allocation9 [shape = 'u8[65536]{0}', space=vmem, size = 0x10000, scoped, tag = 'input window, operand 2']
    #allocation10 [shape = 'u8[131072]{0}', space=vmem, size = 0x20000, scoped, tag = 'output window, operand 0']
    %9 = vsyncpa [#allocation5], 0
    %s10 = scalar_lea.sflag [#allocation5], 1
    %11 = vsyncpa %s10, 0
    %12 = vsyncpa [#allocation8], 0
    %13 = vsyncpa [#allocation6], 0
    %s14 = scalar_lea.sflag [#allocation6], 1
    %15 = vsyncpa %s14, 0
    loop: start=0, step=1, limit=8
    $region2: #{tpu_custom_call.1} parent=1 // loop_pre_header
      _
    $region3: #{tpu_custom_call.1} parent=1 // loop_header
      %s17 = sphi 0, %s21
      %p18 = scmp.ge.s32.totalorder %s17, 8
      %s24 = sphi 0, %s36
      %s25 = sphi 0, %s32
      %s26 = sphi 0, %s24
      %s27 = sphi 0, %s25
      %s28 = sphi 0, %s26
      %s29 = sphi 0, %s27
      %s39 = sphi 0, %s41
      %s42 = sphi 0, %s39
      %s43 = sphi 0, %s42
      %s59 = sphi 0, %s43
      %s63 = sphi 0, %s63
      %s65 = sphi 0, %s63
      %s66 = sphi 0, %s65
      %s80 = sphi 0, %s66
      %s86 = sphi 0, %s88
      %s89 = sphi 0, %s86
      %s90 = sphi 0, %s89
      %s106 = sphi 0, %s90
      %s112 = sphi 0, %s114
      %s115 = sphi 0, %s112
      %s116 = sphi 0, %s115
      %s132 = sphi 0, %s116
      %s138 = sphi 0, %s140
      %s141 = sphi 0, %s138
      %s142 = sphi 0, %s141
      %s158 = sphi 0, %s142
    $region4: #{tpu_custom_call.1} parent=1 // loop_header_branch
      %20 = sbr.rel (%p18) target = $region8
    $region5: #{tpu_custom_call.1} parent=1 // loop_body
      %s22 = ssub.s32 %s17, 1
      %s23 = ssub.s32 %s17, 2
      %s30 = sadd.s32 1, %s25
      %p31 = scmp.ge.s32.totalorder %s30, 2
      %s32 = scalar_select %p31, 0, %s30
      %s33 = sadd.s32 1, %s24
      %s34 = scalar_select %p31, %s33, %s24
      %p35 = scmp.ge.s32.totalorder %s34, 3
      %s36 = scalar_select %p35, 0, %s34
      %s37 = ssub.s32 %s25, %s32
      %p38 = scmp.eq.s32.totalorder %s37, 0
      %s40 = sadd.s32 %s39, 1
      %s41 = scalar_select %p38, %s39, %s40
      %p44 = pneg %p38
      %p45 = scmp.eq.s32.totalorder %s17, 5
      %p46 = por %p44, %p45
      %p47 = scmp.ne.s32.totalorder %s39, %s42
      %p48 = scmp.eq.s32.totalorder %s17, 0
      %p49 = por %p47, %p48
      %p50 = scmp.ne.s32.totalorder %s39, %s42
      %p51 = scmp.eq.s32.totalorder %s22, 5
      %p52 = por %p50, %p51
      %p53 = scmp.ne.s32.totalorder %s42, %s43
      %p54 = scmp.eq.s32.totalorder %s22, 0
      %p55 = por %p53, %p54
      %p56 = scmp.ne.s32.totalorder %s42, %s43
      %p57 = scmp.eq.s32.totalorder %s23, 5
      %p58 = por %p56, %p57
      %p60 = scmp.ne.s32.totalorder %s43, %s59
      %p61 = scmp.eq.s32.totalorder %s23, 0
      %p62 = por %p60, %p61
      %s64 = sadd.s32 %s63, 1
      %p67 = scmp.eq.s32.totalorder %s17, 5
      %p68 = scmp.ne.s32.totalorder %s63, %s65
      %p69 = scmp.eq.s32.totalorder %s17, 0
      %p70 = por %p68, %p69
      %p71 = scmp.ne.s32.totalorder %s63, %s65
      %p72 = scmp.eq.s32.totalorder %s22, 5
      %p73 = por %p71, %p72
      %p74 = scmp.ne.s32.totalorder %s65, %s66
      %p75 = scmp.eq.s32.totalorder %s22, 0
      %p76 = por %p74, %p75
      %p77 = scmp.ne.s32.totalorder %s65, %s66
      %p78 = scmp.eq.s32.totalorder %s23, 5
      %p79 = por %p77, %p78
      %p81 = scmp.ne.s32.totalorder %s66, %s80
      %p82 = scmp.eq.s32.totalorder %s23, 0
      %p83 = por %p81, %p82
      %s84 = ssub.s32 %s24, %s36
      %p85 = scmp.eq.s32.totalorder %s84, 0
      %s87 = sadd.s32 %s86, 1
      %s88 = scalar_select %p85, %s86, %s87
      %p91 = pneg %p85
      %p92 = scmp.eq.s32.totalorder %s17, 5
      %p93 = por %p91, %p92
      %p94 = scmp.ne.s32.totalorder %s86, %s89
      %p95 = scmp.eq.s32.totalorder %s17, 0
      %p96 = por %p94, %p95
      %p97 = scmp.ne.s32.totalorder %s86, %s89
      %p98 = scmp.eq.s32.totalorder %s22, 5
      %p99 = por %p97, %p98
      %p100 = scmp.ne.s32.totalorder %s89, %s90
      %p101 = scmp.eq.s32.totalorder %s22, 0
      %p102 = por %p100, %p101
      %p103 = scmp.ne.s32.totalorder %s89, %s90
      %p104 = scmp.eq.s32.totalorder %s23, 5
      %p105 = por %p103, %p104
      %p107 = scmp.ne.s32.totalorder %s90, %s106
      %p108 = scmp.eq.s32.totalorder %s23, 0
      %p109 = por %p107, %p108
      %s110 = ssub.s32 %s24, %s36
      %p111 = scmp.eq.s32.totalorder %s110, 0
      %s113 = sadd.s32 %s112, 1
      %s114 = scalar_select %p111, %s112, %s113
      %p117 = pneg %p111
      %p118 = scmp.eq.s32.totalorder %s17, 5
      %p119 = por %p117, %p118
      %p120 = scmp.ne.s32.totalorder %s112, %s115
      %p121 = scmp.eq.s32.totalorder %s17, 0
      %p122 = por %p120, %p121
      %p123 = scmp.ne.s32.totalorder %s112, %s115
      %p124 = scmp.eq.s32.totalorder %s22, 5
      %p125 = por %p123, %p124
      %p126 = scmp.ne.s32.totalorder %s115, %s116
      %p127 = scmp.eq.s32.totalorder %s22, 0
      %p128 = por %p126, %p127
      %p129 = scmp.ne.s32.totalorder %s115, %s116
      %p130 = scmp.eq.s32.totalorder %s23, 5
      %p131 = por %p129, %p130
      %p133 = scmp.ne.s32.totalorder %s116, %s132
      %p134 = scmp.eq.s32.totalorder %s23, 0
      %p135 = por %p133, %p134
      %s136 = ssub.s32 %s25, %s32
      %p137 = scmp.eq.s32.totalorder %s136, 0
      %s139 = sadd.s32 %s138, 1
      %s140 = scalar_select %p137, %s138, %s139
      %p143 = pneg %p137
      %p144 = scmp.eq.s32.totalorder %s17, 5
      %p145 = por %p143, %p144
      %p146 = scmp.ne.s32.totalorder %s138, %s141
      %p147 = scmp.eq.s32.totalorder %s17, 0
      %p148 = por %p146, %p147
      %p149 = scmp.ne.s32.totalorder %s138, %s141
      %p150 = scmp.eq.s32.totalorder %s22, 5
      %p151 = por %p149, %p150
      %p152 = scmp.ne.s32.totalorder %s141, %s142
      %p153 = scmp.eq.s32.totalorder %s22, 0
      %p154 = por %p152, %p153
      %p155 = scmp.ne.s32.totalorder %s141, %s142
      %p156 = scmp.eq.s32.totalorder %s23, 5
      %p157 = por %p155, %p156
      %p159 = scmp.ne.s32.totalorder %s142, %s158
      %p160 = scmp.eq.s32.totalorder %s23, 0
      %p161 = por %p159, %p160
      %p162 = scmp.le.s32.totalorder 1, %s17
      %p163 = scmp.lt.s32.totalorder %s17, 7
      %p164 = pnand %p162, %p163
      %p165 = pneg %p164
      // Predicated region
      $region9: #{tpu_custom_call.1} parent=5 // pred_check
        _
      $region10: #{tpu_custom_call.1} parent=5 // pred_check_branch
        %167 = sbr.rel (%p164) target = $region12
      $region11: #{tpu_custom_call.1} parent=5 // pred_region
        %s168 = ssub.s32 %s17, 1
        // Predicated region
        $region13: #{tpu_custom_call.1} parent=11 // pred_check
          %p169 = pneg %p76
        $region14: #{tpu_custom_call.1} parent=11 // pred_check_branch
          %171 = sbr.rel (%p169) target = $region16
        $region15: #{tpu_custom_call.1} parent=11 // pred_region
          %s173 = ssub.s32 2048, 2048
          %174 = vsyncadd [#allocation8], %s173
          %s175 = sshll.u32 [#allocation7], 4
          %s176 = int_to_ptr.vmem [resolvable:$true] %s175
          %181 = dma.hbm_to_vmem [thread:$0]  %s1, 2048, %s176, [#allocation8], 64, 64, 4
        $region16: #{tpu_custom_call.1} parent=11 // pred_fallthru
          _
      $region12: #{tpu_custom_call.1} parent=5 // pred_fallthru
        _
      %p182 = scmp.lt.s32.totalorder %s17, 6
      // Predicated region
      $region17: #{tpu_custom_call.1} parent=5 // pred_check
        %p183 = pneg %p182
      $region18: #{tpu_custom_call.1} parent=5 // pred_check_branch
        %185 = sbr.rel (%p183) target = $region20
      $region19: #{tpu_custom_call.1} parent=5 // pred_region
        // Predicated region
        $region21: #{tpu_custom_call.1} parent=19 // pred_check
          %p186 = pneg %p49
        $region22: #{tpu_custom_call.1} parent=19 // pred_check_branch
          %188 = sbr.rel (%p186) target = $region24
        $region23: #{tpu_custom_call.1} parent=19 // pred_region
          %s189 = sand.u32 %s17, 1
          %s190 = scalar_lea.sflag [#allocation5], %s189
          %s191 = sand.u32 %s39, 1
          %s192 = smul.addr %s191, 128
          %s193 = scalar_lea.vmem [#allocation4], %s192
          %s194 = smul.u32 16, %s25
          %s196 = ssub.s32 2048, 2048
          %197 = vsyncadd %s190, %s196
          %s198 = smul.addr %s194, 2
          %s199 = smul.addr %s198, 64
          %s200 = scalar_lea.hbm %s0, %s199
          %s201 = sshll.u32 %s193, 4
          %s202 = int_to_ptr.vmem [resolvable:$true] %s201
          %207 = dma.hbm_to_vmem [thread:$0]  %s200, 2048, %s202, %s190, 128, 128, 8
        $region24: #{tpu_custom_call.1} parent=19 // pred_fallthru
          _
        // Predicated region
        $region25: #{tpu_custom_call.1} parent=19 // pred_check
          %p208 = pneg %p96
        $region26: #{tpu_custom_call.1} parent=19 // pred_check_branch
          %210 = sbr.rel (%p208) target = $region28
        $region27: #{tpu_custom_call.1} parent=19 // pred_region
          %s211 = sand.u32 %s17, 1
          %s212 = scalar_lea.sflag [#allocation5], %s211
          %s213 = sand.u32 %s86, 1
          %s214 = smul.addr %s213, 64
          %s215 = scalar_lea.vmem [#allocation9], %s214
          %s217 = ssub.s32 1024, 1024
          %218 = vsyncadd %s212, %s217
          %s219 = smul.addr %s24, 16
          %s220 = smul.addr %s219, 64
          %s221 = scalar_lea.hbm %s2, %s220
          %s222 = sshll.u32 %s215, 4
          %s223 = int_to_ptr.vmem [resolvable:$true] %s222
          %228 = dma.hbm_to_vmem [thread:$0]  %s221, 1024, %s223, %s212, 64, 64, 4
        $region28: #{tpu_custom_call.1} parent=19 // pred_fallthru
          _
        // Predicated region
        $region29: #{tpu_custom_call.1} parent=19 // pred_check
          %p229 = pneg %p122
        $region30: #{tpu_custom_call.1} parent=19 // pred_check_branch
          %231 = sbr.rel (%p229) target = $region32
        $region31: #{tpu_custom_call.1} parent=19 // pred_region
          %p232 = scmp.lt.s32.totalorder %s24, 2
          %s233 = scalar_select %p232, %s24, 2
          %s234 = smul.addr %s233, 2
          %s235 = scalar_lea.vmem %s3, %s234
        $region32: #{tpu_custom_call.1} parent=19 // pred_fallthru
          _
      $region20: #{tpu_custom_call.1} parent=5 // pred_fallthru
        _
      %p236 = scmp.le.s32.totalorder 1, %s17
      %p237 = scmp.lt.s32.totalorder %s17, 7
      %p238 = pnand %p236, %p237
      %p239 = pneg %p238
      // Predicated region
      $region33: #{tpu_custom_call.1} parent=5 // pred_check
        _
      $region34: #{tpu_custom_call.1} parent=5 // pred_check_branch
        %241 = sbr.rel (%p238) target = $region36
      $region35: #{tpu_custom_call.1} parent=5 // pred_region
        %s242 = ssub.s32 %s17, 1
        %s243 = sand.u32 %s22, 1
        %s244 = scalar_lea.sflag [#allocation5], %s243
        %s245 = sand.u32 %s42, 1
        %s246 = smul.addr %s245, 128
        %s247 = scalar_lea.vmem [#allocation4], %s246
        // Predicated region
        $region37: #{tpu_custom_call.1} parent=35 // pred_check
          %p248 = pneg %p55
        $region38: #{tpu_custom_call.1} parent=35 // pred_check_branch
          %250 = sbr.rel (%p248) target = $region40
        $region39: #{tpu_custom_call.1} parent=35 // pred_region
          %251 = dma.done %s244, 2048
        $region40: #{tpu_custom_call.1} parent=35 // pred_fallthru
          _
        // Predicated region
        $region41: #{tpu_custom_call.1} parent=35 // pred_check
          %p252 = pneg %p76
        $region42: #{tpu_custom_call.1} parent=35 // pred_check_branch
          %254 = sbr.rel (%p252) target = $region44
        $region43: #{tpu_custom_call.1} parent=35 // pred_region
          %255 = dma.done [#allocation8], 2048
        $region44: #{tpu_custom_call.1} parent=35 // pred_fallthru
          _
        %s256 = sand.u32 %s22, 1
        %s257 = scalar_lea.sflag [#allocation5], %s256
        %s258 = sand.u32 %s89, 1
        %s259 = smul.addr %s258, 64
        %s260 = scalar_lea.vmem [#allocation9], %s259
        // Predicated region
        $region45: #{tpu_custom_call.1} parent=35 // pred_check
          %p261 = pneg %p102
        $region46: #{tpu_custom_call.1} parent=35 // pred_check_branch
          %263 = sbr.rel (%p261) target = $region48
        $region47: #{tpu_custom_call.1} parent=35 // pred_region
          %264 = dma.done %s257, 1024
        $region48: #{tpu_custom_call.1} parent=35 // pred_fallthru
          _
        %s265 = sand.u32 %s22, 1
        %s266 = scalar_lea.sflag [#allocation5], %s265
        %s267 = sand.u32 %s42, 1
        %s268 = smul.addr %s267, 128
        %s269 = scalar_lea.vmem [#allocation4], %s268
        %p270 = pneg %p55
        %p271 = pneg %p52
        %p272 = pneg %p76
        %p273 = pneg %p73
        %s274 = sand.u32 %s22, 1
        %s275 = scalar_lea.sflag [#allocation5], %s274
        %s276 = sand.u32 %s89, 1
        %s277 = smul.addr %s276, 64
        %s278 = scalar_lea.vmem [#allocation9], %s277
        %p279 = pneg %p102
        %p280 = pneg %p99
        %p281 = scmp.lt.s32.totalorder %s26, 2
        %s282 = scalar_select %p281, %s26, 2
        %s283 = smul.addr %s282, 2
        %s284 = scalar_lea.vmem %s3, %s283
        %p285 = pneg %p128
        %p286 = pneg %p125
        %p287 = pneg %p154
        %p288 = pneg %p151
        %s289 = sand.u32 %s141, 1
        %s290 = scalar_lea.sflag [#allocation6], %s289
        %s291 = sand.u32 %s141, 1
        %s292 = smul.addr %s291, 128
        %s293 = scalar_lea.vmem [#allocation10], %s292
        %s294 = smul.u32 16, %s27
        %p295 = scmp.lt.s32.totalorder %s26, 2
        %s296 = scalar_select %p295, %s26, 2
        %s297 = smul.addr %s296, 2
        %s298 = scalar_lea.vmem %s3, %s297
        %s299 = smul.u32 16, %s27
        %p301 = scmp.eq.s32.totalorder %s27, 0
        // Predicated region
        $region49: #{tpu_custom_call.1} parent=35 // pred_check
          %p302 = pneg %p301
        $region50: #{tpu_custom_call.1} parent=35 // pred_check_branch
          %304 = sbr.rel (%p302) target = $region52
        $region51: #{tpu_custom_call.1} parent=35 // pred_region
          %v305 = vld [vmem:[%s260] sm:$0xf]
          %v306 = vld [vmem:[%s260 + $0x4] sm:$0xf]
          %v307 = vld [vmem:[%s260 + $0x8] sm:$0xf]
          %v308 = vld [vmem:[%s260 + $0xc] sm:$0xf]
          %v309 = vld [vmem:[%s260 + $0x10] sm:$0xf]
          %v310 = vld [vmem:[%s260 + $0x14] sm:$0xf]
          %v311 = vld [vmem:[%s260 + $0x18] sm:$0xf]
          %v312 = vld [vmem:[%s260 + $0x1c] sm:$0xf]
          %v313 = vld [vmem:[%s260 + $0x20] sm:$0xf]
          %v314 = vld [vmem:[%s260 + $0x24] sm:$0xf]
          %v315 = vld [vmem:[%s260 + $0x28] sm:$0xf]
          %v316 = vld [vmem:[%s260 + $0x2c] sm:$0xf]
          %v317 = vld [vmem:[%s260 + $0x30] sm:$0xf]
          %v318 = vld [vmem:[%s260 + $0x34] sm:$0xf]
          %v319 = vld [vmem:[%s260 + $0x38] sm:$0xf]
          %v320 = vld [vmem:[%s260 + $0x3c] sm:$0xf]
          %p321 = scmp.eq.s32.totalorder %s26, 0
          // Predicated region
          $region53: #{tpu_custom_call.1} parent=51 // pred_check
            %p322 = pneg %p321
          $region54: #{tpu_custom_call.1} parent=51 // pred_check_branch
            %324 = sbr.rel (%p322) target = $region56
          $region55: #{tpu_custom_call.1} parent=51 // pred_region
            %v325 = vld [vmem:[#allocation7] sm:$0xf]
            %v326 = vld [vmem:[#allocation7 + $0x4] sm:$0xf]
            %v327 = vld [vmem:[#allocation7 + $0x8] sm:$0xf]
            %v328 = vld [vmem:[#allocation7 + $0xc] sm:$0xf]
            %v329 = vld [vmem:[#allocation7 + $0x10] sm:$0xf]
            %v330 = vld [vmem:[#allocation7 + $0x14] sm:$0xf]
            %v331 = vld [vmem:[#allocation7 + $0x18] sm:$0xf]
            %v332 = vld [vmem:[#allocation7 + $0x1c] sm:$0xf]
            %v333 = vld [vmem:[#allocation7 + $0x20] sm:$0xf]
            %v334 = vld [vmem:[#allocation7 + $0x24] sm:$0xf]
            %v335 = vld [vmem:[#allocation7 + $0x28] sm:$0xf]
            %v336 = vld [vmem:[#allocation7 + $0x2c] sm:$0xf]
            %v337 = vld [vmem:[#allocation7 + $0x30] sm:$0xf]
            %v338 = vld [vmem:[#allocation7 + $0x34] sm:$0xf]
            %v339 = vld [vmem:[#allocation7 + $0x38] sm:$0xf]
            %v340 = vld [vmem:[#allocation7 + $0x3c] sm:$0xf]
            %v341 = vld [vmem:[#allocation7 + $0x40] sm:$0xf]
            %v342 = vld [vmem:[#allocation7 + $0x44] sm:$0xf]
            %v343 = vld [vmem:[#allocation7 + $0x48] sm:$0xf]
            %v344 = vld [vmem:[#allocation7 + $0x4c] sm:$0xf]
            %v345 = vld [vmem:[#allocation7 + $0x50] sm:$0xf]
            %v346 = vld [vmem:[#allocation7 + $0x54] sm:$0xf]
            %v347 = vld [vmem:[#allocation7 + $0x58] sm:$0xf]
            %v348 = vld [vmem:[#allocation7 + $0x5c] sm:$0xf]
            %v349 = vld [vmem:[#allocation7 + $0x60] sm:$0xf]
            %v350 = vld [vmem:[#allocation7 + $0x64] sm:$0xf]
            %v351 = vld [vmem:[#allocation7 + $0x68] sm:$0xf]
            %v352 = vld [vmem:[#allocation7 + $0x6c] sm:$0xf]
            %v353 = vld [vmem:[#allocation7 + $0x70] sm:$0xf]
            %v354 = vld [vmem:[#allocation7 + $0x74] sm:$0xf]
            %v355 = vld [vmem:[#allocation7 + $0x78] sm:$0xf]
            %v356 = vld [vmem:[#allocation7 + $0x7c] sm:$0xf]
            %v389 = vunpack.c.l.b16 %v325
            %v390 = vunpack.c.l.b16 %v326
            %v391 = vunpack.c.l.b16 %v327
            %v392 = vunpack.c.l.b16 %v328
            %v393 = vunpack.c.l.b16 %v329
            %v394 = vunpack.c.l.b16 %v330
            %v395 = vunpack.c.l.b16 %v331
            %v396 = vunpack.c.l.b16 %v332
            %v397 = vunpack.c.l.b16 %v333
            %v398 = vunpack.c.l.b16 %v334
            %v399 = vunpack.c.l.b16 %v335
            %v400 = vunpack.c.l.b16 %v336
            %v401 = vunpack.c.l.b16 %v337
            %v402 = vunpack.c.l.b16 %v338
            %v403 = vunpack.c.l.b16 %v339
            %v404 = vunpack.c.l.b16 %v340
            %v405 = vunpack.c.l.b16 %v341
            %v406 = vunpack.c.l.b16 %v342
            %v407 = vunpack.c.l.b16 %v343
            %v408 = vunpack.c.l.b16 %v344
            %v409 = vunpack.c.l.b16 %v345
            %v410 = vunpack.c.l.b16 %v346
            %v411 = vunpack.c.l.b16 %v347
            %v412 = vunpack.c.l.b16 %v348
            %v413 = vunpack.c.l.b16 %v349
            %v414 = vunpack.c.l.b16 %v350
            %v415 = vunpack.c.l.b16 %v351
            %v416 = vunpack.c.l.b16 %v352
            %v417 = vunpack.c.l.b16 %v353
            %v418 = vunpack.c.l.b16 %v354
            %v419 = vunpack.c.l.b16 %v355
            %v420 = vunpack.c.l.b16 %v356
            %v421 = vpack.c.b16 %v390, %v389
            %v422 = vpack.c.b16 %v392, %v391
            %v423 = vpack.c.b16 %v394, %v393
            %v424 = vpack.c.b16 %v396, %v395
            %v425 = vpack.c.b16 %v398, %v397
            %v426 = vpack.c.b16 %v400, %v399
            %v427 = vpack.c.b16 %v402, %v401
            %v428 = vpack.c.b16 %v404, %v403
            %v429 = vpack.c.b16 %v406, %v405
            %v430 = vpack.c.b16 %v408, %v407
            %v431 = vpack.c.b16 %v410, %v409
            %v432 = vpack.c.b16 %v412, %v411
            %v433 = vpack.c.b16 %v414, %v413
            %v434 = vpack.c.b16 %v416, %v415
            %v435 = vpack.c.b16 %v418, %v417
            %v436 = vpack.c.b16 %v420, %v419
            %v469 = vunpack.c.l.b16 %v305
            %v470 = vunpack.c.l.b16 %v306
            %v471 = vunpack.c.l.b16 %v307
            %v472 = vunpack.c.l.b16 %v308
            %v473 = vunpack.c.l.b16 %v309
            %v474 = vunpack.c.l.b16 %v310
            %v475 = vunpack.c.l.b16 %v311
            %v476 = vunpack.c.l.b16 %v312
            %v477 = vunpack.c.l.b16 %v313
            %v478 = vunpack.c.l.b16 %v314
            %v479 = vunpack.c.l.b16 %v315
            %v480 = vunpack.c.l.b16 %v316
            %v481 = vunpack.c.l.b16 %v317
            %v482 = vunpack.c.l.b16 %v318
            %v483 = vunpack.c.l.b16 %v319
            %v484 = vunpack.c.l.b16 %v320
            %v485 = vpack.c.b16 %v470, %v469
            %v486 = vpack.c.b16 %v472, %v471
            %v487 = vpack.c.b16 %v474, %v473
            %v488 = vpack.c.b16 %v476, %v475
            %v489 = vpack.c.b16 %v478, %v477
            %v490 = vpack.c.b16 %v480, %v479
            %v491 = vpack.c.b16 %v482, %v481
            %v492 = vpack.c.b16 %v484, %v483
            %501 = vmatprep.subr.bf16.mxu0 0
            %502 = vmatpush1.bf16.msra.mxu0 %v485
            %503 = vmatprep.subr.bf16.mxu0 0
            %504 = vmatpush1.bf16.msra.mxu0 %v486
            %505 = vmatprep.subr.bf16.mxu0 0
            %506 = vmatpush1.bf16.msra.mxu0 %v487
            %507 = vmatprep.subr.bf16.mxu0 0
            %508 = vmatpush1.bf16.msra.mxu0 %v488
            %509 = vmatprep.subr.bf16.mxu0 0
            %510 = vmatpush1.bf16.msra.mxu0 %v489
            %511 = vmatprep.subr.bf16.mxu0 0
            %512 = vmatpush1.bf16.msra.mxu0 %v490
            %513 = vmatprep.subr.bf16.mxu0 0
            %514 = vmatpush1.bf16.msra.mxu0 %v491
            %515 = vmatprep.subr.bf16.mxu0 0
            %516 = vmatpush1.bf16.msra.mxu0 %v492
            %517 = vmatprep.subr.bf16.mxu0 0
            %518 = vmatpush1.bf16.msra.mxu0 0
            %519 = vmatprep.subr.bf16.mxu0 0
            %520 = vmatpush1.bf16.msra.mxu0 0
            %521 = vmatprep.subr.bf16.mxu0 0
            %522 = vmatpush1.bf16.msra.mxu0 0
            %523 = vmatprep.subr.bf16.mxu0 0
            %524 = vmatpush1.bf16.msra.mxu0 0
            %525 = vmatprep.subr.bf16.mxu0 0
            %526 = vmatpush1.bf16.msra.mxu0 0
            %527 = vmatprep.subr.bf16.mxu0 0
            %528 = vmatpush1.bf16.msra.mxu0 0
            %529 = vmatprep.subr.bf16.mxu0 0
            %530 = vmatpush1.bf16.msra.mxu0 0
            %531 = vmatprep.subr.bf16.mxu0 0
            %532 = vmatpush1.bf16.msra.mxu0 0
            %533 = vmatprep.mubr.bf16.mxu0 0
            %534 = vmatmul.mubr.bf16.gmra.mrb[0].mxu0 %v421
            %v535 = vpop.f32.mrb[0].mxu0
            %v536 = vadd.f32 0.0, %v535
            %v537 = vpop.f32.mrb[0].mxu0
            %v538 = vpop.f32.mrb[0].mxu0
            %v539 = vadd.f32 0.0, %v538
            %v540 = vpop.f32.mrb[0].mxu0
            %541 = vmatprep.mubr.bf16.mxu0 0
            %542 = vmatmul.mubr.bf16.gmra.mrb[0].mxu0 %v422
            %v543 = vpop.f32.mrb[0].mxu0
            %v544 = vadd.f32 0.0, %v543
            %v545 = vpop.f32.mrb[0].mxu0
            %v546 = vpop.f32.mrb[0].mxu0
            %v547 = vadd.f32 0.0, %v546
            %v548 = vpop.f32.mrb[0].mxu0
            %549 = vmatprep.mubr.bf16.mxu0 0
            %550 = vmatmul.mubr.bf16.gmra.mrb[0].mxu0 %v423
            %v551 = vpop.f32.mrb[0].mxu0
            %v552 = vadd.f32 0.0, %v551
            %v553 = vpop.f32.mrb[0].mxu0
            %v554 = vpop.f32.mrb[0].mxu0
            %v555 = vadd.f32 0.0, %v554
            %v556 = vpop.f32.mrb[0].mxu0
            %557 = vmatprep.mubr.bf16.mxu0 0
            %558 = vmatmul.mubr.bf16.gmra.mrb[0].mxu0 %v424
            %v559 = vpop.f32.mrb[0].mxu0
            %v560 = vadd.f32 0.0, %v559
            %v561 = vpop.f32.mrb[0].mxu0
            %v562 = vpop.f32.mrb[0].mxu0
            %v563 = vadd.f32 0.0, %v562
            %v564 = vpop.f32.mrb[0].mxu0
            %565 = vmatprep.mubr.bf16.mxu0 0
            %566 = vmatmul.mubr.bf16.gmra.mrb[0].mxu0 %v425
            %v567 = vpop.f32.mrb[0].mxu0
            %v568 = vadd.f32 0.0, %v567
            %v569 = vpop.f32.mrb[0].mxu0
            %v570 = vpop.f32.mrb[0].mxu0
            %v571 = vadd.f32 0.0, %v570
            %v572 = vpop.f32.mrb[0].mxu0
            %573 = vmatprep.mubr.bf16.mxu0 0
            %574 = vmatmul.mubr.bf16.gmra.mrb[0].mxu0 %v426
            %v575 = vpop.f32.mrb[0].mxu0
            %v576 = vadd.f32 0.0, %v575
            %v577 = vpop.f32.mrb[0].mxu0
            %v578 = vpop.f32.mrb[0].mxu0
            %v579 = vadd.f32 0.0, %v578
            %v580 = vpop.f32.mrb[0].mxu0
            %581 = vmatprep.mubr.bf16.mxu0 0
            %582 = vmatmul.mubr.bf16.gmra.mrb[0].mxu0 %v427
            %v583 = vpop.f32.mrb[0].mxu0
            %v584 = vadd.f32 0.0, %v583
            %v585 = vpop.f32.mrb[0].mxu0
            %v586 = vpop.f32.mrb[0].mxu0
            %v587 = vadd.f32 0.0, %v586
            %v588 = vpop.f32.mrb[0].mxu0
            %589 = vmatprep.mubr.bf16.mxu0 0
            %590 = vmatmul.mubr.bf16.gmra.mrb[0].mxu0 %v428
            %v591 = vpop.f32.mrb[0].mxu0
            %v592 = vadd.f32 0.0, %v591
            %v593 = vpop.f32.mrb[0].mxu0
            %v594 = vpop.f32.mrb[0].mxu0
            %v595 = vadd.f32 0.0, %v594
            %v596 = vpop.f32.mrb[0].mxu0
            %597 = vmatprep.mubr.bf16.mxu0 0
            %598 = vmatmul.mubr.bf16.gmra.mrb[0].mxu0 %v429
            %v599 = vpop.f32.mrb[0].mxu0
            %v600 = vadd.f32 0.0, %v599
            %v601 = vpop.f32.mrb[0].mxu0
            %v602 = vpop.f32.mrb[0].mxu0
            %v603 = vadd.f32 0.0, %v602
            %v604 = vpop.f32.mrb[0].mxu0
            %605 = vmatprep.mubr.bf16.mxu0 0
            %606 = vmatmul.mubr.bf16.gmra.mrb[0].mxu0 %v430
            %v607 = vpop.f32.mrb[0].mxu0
            %v608 = vadd.f32 0.0, %v607
            %v609 = vpop.f32.mrb[0].mxu0
            %v610 = vpop.f32.mrb[0].mxu0
            %v611 = vadd.f32 0.0, %v610
            %v612 = vpop.f32.mrb[0].mxu0
            %613 = vmatprep.mubr.bf16.mxu0 0
            %614 = vmatmul.mubr.bf16.gmra.mrb[0].mxu0 %v431
            %v615 = vpop.f32.mrb[0].mxu0
            %v616 = vadd.f32 0.0, %v615
            %v617 = vpop.f32.mrb[0].mxu0
            %v618 = vpop.f32.mrb[0].mxu0
            %v619 = vadd.f32 0.0, %v618
            %v620 = vpop.f32.mrb[0].mxu0
            %621 = vmatprep.mubr.bf16.mxu0 0
            %622 = vmatmul.mubr.bf16.gmra.mrb[0].mxu0 %v432
            %v623 = vpop.f32.mrb[0].mxu0
            %v624 = vadd.f32 0.0, %v623
            %v625 = vpop.f32.mrb[0].mxu0
            %v626 = vpop.f32.mrb[0].mxu0
            %v627 = vadd.f32 0.0, %v626
            %v628 = vpop.f32.mrb[0].mxu0
            %629 = vmatprep.mubr.bf16.mxu0 0
            %630 = vmatmul.mubr.bf16.gmra.mrb[0].mxu0 %v433
            %v631 = vpop.f32.mrb[0].mxu0
            %v632 = vadd.f32 0.0, %v631
            %v633 = vpop.f32.mrb[0].mxu0
            %v634 = vpop.f32.mrb[0].mxu0
            %v635 = vadd.f32 0.0, %v634
            %v636 = vpop.f32.mrb[0].mxu0
            %637 = vmatprep.mubr.bf16.mxu0 0
            %638 = vmatmul.mubr.bf16.gmra.mrb[0].mxu0 %v434
            %v639 = vpop.f32.mrb[0].mxu0
            %v640 = vadd.f32 0.0, %v639
            %v641 = vpop.f32.mrb[0].mxu0
            %v642 = vpop.f32.mrb[0].mxu0
            %v643 = vadd.f32 0.0, %v642
            %v644 = vpop.f32.mrb[0].mxu0
            %645 = vmatprep.mubr.bf16.mxu0 0
            %646 = vmatmul.mubr.bf16.gmra.mrb[0].mxu0 %v435
            %v647 = vpop.f32.mrb[0].mxu0
            %v648 = vadd.f32 0.0, %v647
            %v649 = vpop.f32.mrb[0].mxu0
            %v650 = vpop.f32.mrb[0].mxu0
            %v651 = vadd.f32 0.0, %v650
            %v652 = vpop.f32.mrb[0].mxu0
            %653 = vmatprep.mubr.bf16.mxu0 0
            %654 = vmatmul.mubr.bf16.gmra.mrb[0].mxu0 %v436
            %v655 = vpop.f32.mrb[0].mxu0
            %v656 = vadd.f32 0.0, %v655
            %v657 = vpop.f32.mrb[0].mxu0
            %v658 = vpop.f32.mrb[0].mxu0
            %v659 = vadd.f32 0.0, %v658
            %v660 = vpop.f32.mrb[0].mxu0
            %661 = vdwg.mxu0
            %v662 = vpack.c.bf16 %v539, %v536
            %v663 = vpack.c.bf16 %v547, %v544
            %v664 = vpack.c.bf16 %v555, %v552
            %v665 = vpack.c.bf16 %v563, %v560
            %v666 = vpack.c.bf16 %v571, %v568
            %v667 = vpack.c.bf16 %v579, %v576
            %v668 = vpack.c.bf16 %v587, %v584
            %v669 = vpack.c.bf16 %v595, %v592
            %v670 = vpack.c.bf16 %v603, %v600
            %v671 = vpack.c.bf16 %v611, %v608
            %v672 = vpack.c.bf16 %v619, %v616
            %v673 = vpack.c.bf16 %v627, %v624
            %v674 = vpack.c.bf16 %v635, %v632
            %v675 = vpack.c.bf16 %v643, %v640
            %v676 = vpack.c.bf16 %v651, %v648
            %v677 = vpack.c.bf16 %v659, %v656
            %678 = vst [vmem:[#allocation3] sm:$0xff] %v662
            %679 = vst [vmem:[#allocation3 + $0x8] sm:$0xff] %v663
            %680 = vst [vmem:[#allocation3 + $0x10] sm:$0xff] %v664
            %681 = vst [vmem:[#allocation3 + $0x18] sm:$0xff] %v665
            %682 = vst [vmem:[#allocation3 + $0x20] sm:$0xff] %v666
            %683 = vst [vmem:[#allocation3 + $0x28] sm:$0xff] %v667
            %684 = vst [vmem:[#allocation3 + $0x30] sm:$0xff] %v668
            %685 = vst [vmem:[#allocation3 + $0x38] sm:$0xff] %v669
            %686 = vst [vmem:[#allocation3 + $0x40] sm:$0xff] %v670
            %687 = vst [vmem:[#allocation3 + $0x48] sm:$0xff] %v671
            %688 = vst [vmem:[#allocation3 + $0x50] sm:$0xff] %v672
            %689 = vst [vmem:[#allocation3 + $0x58] sm:$0xff] %v673
            %690 = vst [vmem:[#allocation3 + $0x60] sm:$0xff] %v674
            %691 = vst [vmem:[#allocation3 + $0x68] sm:$0xff] %v675
            %692 = vst [vmem:[#allocation3 + $0x70] sm:$0xff] %v676
            %693 = vst [vmem:[#allocation3 + $0x78] sm:$0xff] %v677
          $region56: #{tpu_custom_call.1} parent=51 // pred_fallthru
            _
          %p694 = scmp.ne.s32.totalorder %s26, 0
          // Predicated region
          $region57: #{tpu_custom_call.1} parent=51 // pred_check
            %p695 = pneg %p694
          $region58: #{tpu_custom_call.1} parent=51 // pred_check_branch
            %697 = sbr.rel (%p695) target = $region60
          $region59: #{tpu_custom_call.1} parent=51 // pred_region
            %v698 = vld [vmem:[#allocation2] sm:$0xff]
            %v699 = vld [vmem:[#allocation2 + $0x8] sm:$0xff]
            %v700 = vld [vmem:[#allocation2 + $0x10] sm:$0xff]
            %v701 = vld [vmem:[#allocation2 + $0x18] sm:$0xff]
            %v702 = vld [vmem:[#allocation2 + $0x20] sm:$0xff]
            %v703 = vld [vmem:[#allocation2 + $0x28] sm:$0xff]
            %v704 = vld [vmem:[#allocation2 + $0x30] sm:$0xff]
            %v705 = vld [vmem:[#allocation2 + $0x38] sm:$0xff]
            %v706 = vld [vmem:[#allocation2 + $0x40] sm:$0xff]
            %v707 = vld [vmem:[#allocation2 + $0x48] sm:$0xff]
            %v708 = vld [vmem:[#allocation2 + $0x50] sm:$0xff]
            %v709 = vld [vmem:[#allocation2 + $0x58] sm:$0xff]
            %v710 = vld [vmem:[#allocation2 + $0x60] sm:$0xff]
            %v711 = vld [vmem:[#allocation2 + $0x68] sm:$0xff]
            %v712 = vld [vmem:[#allocation2 + $0x70] sm:$0xff]
            %v713 = vld [vmem:[#allocation2 + $0x78] sm:$0xff]
            %v730 = vunpack.c.l.b16 %v305
            %v731 = vunpack.c.l.b16 %v306
            %v732 = vunpack.c.l.b16 %v307
            %v733 = vunpack.c.l.b16 %v308
            %v734 = vunpack.c.l.b16 %v309
            %v735 = vunpack.c.l.b16 %v310
            %v736 = vunpack.c.l.b16 %v311
            %v737 = vunpack.c.l.b16 %v312
            %v738 = vunpack.c.l.b16 %v313
            %v739 = vunpack.c.l.b16 %v314
            %v740 = vunpack.c.l.b16 %v315
            %v741 = vunpack.c.l.b16 %v316
            %v742 = vunpack.c.l.b16 %v317
            %v743 = vunpack.c.l.b16 %v318
            %v744 = vunpack.c.l.b16 %v319
            %v745 = vunpack.c.l.b16 %v320
            %v746 = vpack.c.b16 %v731, %v730
            %v747 = vpack.c.b16 %v733, %v732
            %v748 = vpack.c.b16 %v735, %v734
            %v749 = vpack.c.b16 %v737, %v736
            %v750 = vpack.c.b16 %v739, %v738
            %v751 = vpack.c.b16 %v741, %v740
            %v752 = vpack.c.b16 %v743, %v742
            %v753 = vpack.c.b16 %v745, %v744
            %762 = vmatprep.subr.bf16.mxu0 0
            %763 = vmatpush1.bf16.msra.mxu0 %v746
            %764 = vmatprep.subr.bf16.mxu0 0
            %765 = vmatpush1.bf16.msra.mxu0 %v747
            %766 = vmatprep.subr.bf16.mxu0 0
            %767 = vmatpush1.bf16.msra.mxu0 %v748
            %768 = vmatprep.subr.bf16.mxu0 0
            %769 = vmatpush1.bf16.msra.mxu0 %v749
            %770 = vmatprep.subr.bf16.mxu0 0
            %771 = vmatpush1.bf16.msra.mxu0 %v750
            %772 = vmatprep.subr.bf16.mxu0 0
            %773 = vmatpush1.bf16.msra.mxu0 %v751
            %774 = vmatprep.subr.bf16.mxu0 0
            %775 = vmatpush1.bf16.msra.mxu0 %v752
            %776 = vmatprep.subr.bf16.mxu0 0
            %777 = vmatpush1.bf16.msra.mxu0 %v753
            %778 = vmatprep.subr.bf16.mxu0 0
            %779 = vmatpush1.bf16.msra.mxu0 0
            %780 = vmatprep.subr.bf16.mxu0 0
            %781 = vmatpush1.bf16.msra.mxu0 0
            %782 = vmatprep.subr.bf16.mxu0 0
            %783 = vmatpush1.bf16.msra.mxu0 0
            %784 = vmatprep.subr.bf16.mxu0 0
            %785 = vmatpush1.bf16.msra.mxu0 0
            %786 = vmatprep.subr.bf16.mxu0 0
            %787 = vmatpush1.bf16.msra.mxu0 0
            %788 = vmatprep.subr.bf16.mxu0 0
            %789 = vmatpush1.bf16.msra.mxu0 0
            %790 = vmatprep.subr.bf16.mxu0 0
            %791 = vmatpush1.bf16.msra.mxu0 0
            %792 = vmatprep.subr.bf16.mxu0 0
            %793 = vmatpush1.bf16.msra.mxu0 0
            %794 = vmatprep.mubr.bf16.mxu0 0
            %795 = vmatmul.mubr.bf16.gmra.mrb[0].mxu0 %v698
            %v796 = vpop.f32.mrb[0].mxu0
            %v797 = vadd.f32 0.0, %v796
            %v798 = vpop.f32.mrb[0].mxu0
            %v799 = vpop.f32.mrb[0].mxu0
            %v800 = vadd.f32 0.0, %v799
            %v801 = vpop.f32.mrb[0].mxu0
            %802 = vmatprep.mubr.bf16.mxu0 0
            %803 = vmatmul.mubr.bf16.gmra.mrb[0].mxu0 %v699
            %v804 = vpop.f32.mrb[0].mxu0
            %v805 = vadd.f32 0.0, %v804
            %v806 = vpop.f32.mrb[0].mxu0
            %v807 = vpop.f32.mrb[0].mxu0
            %v808 = vadd.f32 0.0, %v807
            %v809 = vpop.f32.mrb[0].mxu0
            %810 = vmatprep.mubr.bf16.mxu0 0
            %811 = vmatmul.mubr.bf16.gmra.mrb[0].mxu0 %v700
            %v812 = vpop.f32.mrb[0].mxu0
            %v813 = vadd.f32 0.0, %v812
            %v814 = vpop.f32.mrb[0].mxu0
            %v815 = vpop.f32.mrb[0].mxu0
            %v816 = vadd.f32 0.0, %v815
            %v817 = vpop.f32.mrb[0].mxu0
            %818 = vmatprep.mubr.bf16.mxu0 0
            %819 = vmatmul.mubr.bf16.gmra.mrb[0].mxu0 %v701
            %v820 = vpop.f32.mrb[0].mxu0
            %v821 = vadd.f32 0.0, %v820
            %v822 = vpop.f32.mrb[0].mxu0
            %v823 = vpop.f32.mrb[0].mxu0
            %v824 = vadd.f32 0.0, %v823
            %v825 = vpop.f32.mrb[0].mxu0
            %826 = vmatprep.mubr.bf16.mxu0 0
            %827 = vmatmul.mubr.bf16.gmra.mrb[0].mxu0 %v702
            %v828 = vpop.f32.mrb[0].mxu0
            %v829 = vadd.f32 0.0, %v828
            %v830 = vpop.f32.mrb[0].mxu0
            %v831 = vpop.f32.mrb[0].mxu0
            %v832 = vadd.f32 0.0, %v831
            %v833 = vpop.f32.mrb[0].mxu0
            %834 = vmatprep.mubr.bf16.mxu0 0
            %835 = vmatmul.mubr.bf16.gmra.mrb[0].mxu0 %v703
            %v836 = vpop.f32.mrb[0].mxu0
            %v837 = vadd.f32 0.0, %v836
            %v838 = vpop.f32.mrb[0].mxu0
            %v839 = vpop.f32.mrb[0].mxu0
            %v840 = vadd.f32 0.0, %v839
            %v841 = vpop.f32.mrb[0].mxu0
            %842 = vmatprep.mubr.bf16.mxu0 0
            %843 = vmatmul.mubr.bf16.gmra.mrb[0].mxu0 %v704
            %v844 = vpop.f32.mrb[0].mxu0
            %v845 = vadd.f32 0.0, %v844
            %v846 = vpop.f32.mrb[0].mxu0
            %v847 = vpop.f32.mrb[0].mxu0
            %v848 = vadd.f32 0.0, %v847
            %v849 = vpop.f32.mrb[0].mxu0
            %850 = vmatprep.mubr.bf16.mxu0 0
            %851 = vmatmul.mubr.bf16.gmra.mrb[0].mxu0 %v705
            %v852 = vpop.f32.mrb[0].mxu0
            %v853 = vadd.f32 0.0, %v852
            %v854 = vpop.f32.mrb[0].mxu0
            %v855 = vpop.f32.mrb[0].mxu0
            %v856 = vadd.f32 0.0, %v855
            %v857 = vpop.f32.mrb[0].mxu0
            %858 = vmatprep.mubr.bf16.mxu0 0
            %859 = vmatmul.mubr.bf16.gmra.mrb[0].mxu0 %v706
            %v860 = vpop.f32.mrb[0].mxu0
            %v861 = vadd.f32 0.0, %v860
            %v862 = vpop.f32.mrb[0].mxu0
            %v863 = vpop.f32.mrb[0].mxu0
            %v864 = vadd.f32 0.0, %v863
            %v865 = vpop.f32.mrb[0].mxu0
            %866 = vmatprep.mubr.bf16.mxu0 0
            %867 = vmatmul.mubr.bf16.gmra.mrb[0].mxu0 %v707
            %v868 = vpop.f32.mrb[0].mxu0
            %v869 = vadd.f32 0.0, %v868
            %v870 = vpop.f32.mrb[0].mxu0
            %v871 = vpop.f32.mrb[0].mxu0
            %v872 = vadd.f32 0.0, %v871
            %v873 = vpop.f32.mrb[0].mxu0
            %874 = vmatprep.mubr.bf16.mxu0 0
            %875 = vmatmul.mubr.bf16.gmra.mrb[0].mxu0 %v708
            %v876 = vpop.f32.mrb[0].mxu0
            %v877 = vadd.f32 0.0, %v876
            %v878 = vpop.f32.mrb[0].mxu0
            %v879 = vpop.f32.mrb[0].mxu0
            %v880 = vadd.f32 0.0, %v879
            %v881 = vpop.f32.mrb[0].mxu0
            %882 = vmatprep.mubr.bf16.mxu0 0
            %883 = vmatmul.mubr.bf16.gmra.mrb[0].mxu0 %v709
            %v884 = vpop.f32.mrb[0].mxu0
            %v885 = vadd.f32 0.0, %v884
            %v886 = vpop.f32.mrb[0].mxu0
            %v887 = vpop.f32.mrb[0].mxu0
            %v888 = vadd.f32 0.0, %v887
            %v889 = vpop.f32.mrb[0].mxu0
            %890 = vmatprep.mubr.bf16.mxu0 0
            %891 = vmatmul.mubr.bf16.gmra.mrb[0].mxu0 %v710
            %v892 = vpop.f32.mrb[0].mxu0
            %v893 = vadd.f32 0.0, %v892
            %v894 = vpop.f32.mrb[0].mxu0
            %v895 = vpop.f32.mrb[0].mxu0
            %v896 = vadd.f32 0.0, %v895
            %v897 = vpop.f32.mrb[0].mxu0
            %898 = vmatprep.mubr.bf16.mxu0 0
            %899 = vmatmul.mubr.bf16.gmra.mrb[0].mxu0 %v711
            %v900 = vpop.f32.mrb[0].mxu0
            %v901 = vadd.f32 0.0, %v900
            %v902 = vpop.f32.mrb[0].mxu0
            %v903 = vpop.f32.mrb[0].mxu0
            %v904 = vadd.f32 0.0, %v903
            %v905 = vpop.f32.mrb[0].mxu0
            %906 = vmatprep.mubr.bf16.mxu0 0
            %907 = vmatmul.mubr.bf16.gmra.mrb[0].mxu0 %v712
            %v908 = vpop.f32.mrb[0].mxu0
            %v909 = vadd.f32 0.0, %v908
            %v910 = vpop.f32.mrb[0].mxu0
            %v911 = vpop.f32.mrb[0].mxu0
            %v912 = vadd.f32 0.0, %v911
            %v913 = vpop.f32.mrb[0].mxu0
            %914 = vmatprep.mubr.bf16.mxu0 0
            %915 = vmatmul.mubr.bf16.gmra.mrb[0].mxu0 %v713
            %v916 = vpop.f32.mrb[0].mxu0
            %v917 = vadd.f32 0.0, %v916
            %v918 = vpop.f32.mrb[0].mxu0
            %v919 = vpop.f32.mrb[0].mxu0
            %v920 = vadd.f32 0.0, %v919
            %v921 = vpop.f32.mrb[0].mxu0
            %922 = vdwg.mxu0
            %v923 = vpack.c.bf16 %v800, %v797
            %v924 = vpack.c.bf16 %v808, %v805
            %v925 = vpack.c.bf16 %v816, %v813
            %v926 = vpack.c.bf16 %v824, %v821
            %v927 = vpack.c.bf16 %v832, %v829
            %v928 = vpack.c.bf16 %v840, %v837
            %v929 = vpack.c.bf16 %v848, %v845
            %v930 = vpack.c.bf16 %v856, %v853
            %v931 = vpack.c.bf16 %v864, %v861
            %v932 = vpack.c.bf16 %v872, %v869
            %v933 = vpack.c.bf16 %v880, %v877
            %v934 = vpack.c.bf16 %v888, %v885
            %v935 = vpack.c.bf16 %v896, %v893
            %v936 = vpack.c.bf16 %v904, %v901
            %v937 = vpack.c.bf16 %v912, %v909
            %v938 = vpack.c.bf16 %v920, %v917
            %939 = vst [vmem:[#allocation3] sm:$0xff] %v923
            %940 = vst [vmem:[#allocation3 + $0x8] sm:$0xff] %v924
            %941 = vst [vmem:[#allocation3 + $0x10] sm:$0xff] %v925
            %942 = vst [vmem:[#allocation3 + $0x18] sm:$0xff] %v926
            %943 = vst [vmem:[#allocation3 + $0x20] sm:$0xff] %v927
            %944 = vst [vmem:[#allocation3 + $0x28] sm:$0xff] %v928
            %945 = vst [vmem:[#allocation3 + $0x30] sm:$0xff] %v929
            %946 = vst [vmem:[#allocation3 + $0x38] sm:$0xff] %v930
            %947 = vst [vmem:[#allocation3 + $0x40] sm:$0xff] %v931
            %948 = vst [vmem:[#allocation3 + $0x48] sm:$0xff] %v932
            %949 = vst [vmem:[#allocation3 + $0x50] sm:$0xff] %v933
            %950 = vst [vmem:[#allocation3 + $0x58] sm:$0xff] %v934
            %951 = vst [vmem:[#allocation3 + $0x60] sm:$0xff] %v935
            %952 = vst [vmem:[#allocation3 + $0x68] sm:$0xff] %v936
            %953 = vst [vmem:[#allocation3 + $0x70] sm:$0xff] %v937
            %954 = vst [vmem:[#allocation3 + $0x78] sm:$0xff] %v938
          $region60: #{tpu_custom_call.1} parent=51 // pred_fallthru
            _
        $region52: #{tpu_custom_call.1} parent=35 // pred_fallthru
          _
        %v955 = vld [vmem:[%s247] sm:$0xff]
        %v956 = vld [vmem:[%s247 + $0x8] sm:$0xff]
        %v957 = vld [vmem:[%s247 + $0x10] sm:$0xff]
        %v958 = vld [vmem:[%s247 + $0x18] sm:$0xff]
        %v959 = vld [vmem:[%s247 + $0x20] sm:$0xff]
        %v960 = vld [vmem:[%s247 + $0x28] sm:$0xff]
        %v961 = vld [vmem:[%s247 + $0x30] sm:$0xff]
        %v962 = vld [vmem:[%s247 + $0x38] sm:$0xff]
        %v963 = vld [vmem:[%s247 + $0x40] sm:$0xff]
        %v964 = vld [vmem:[%s247 + $0x48] sm:$0xff]
        %v965 = vld [vmem:[%s247 + $0x50] sm:$0xff]
        %v966 = vld [vmem:[%s247 + $0x58] sm:$0xff]
        %v967 = vld [vmem:[%s247 + $0x60] sm:$0xff]
        %v968 = vld [vmem:[%s247 + $0x68] sm:$0xff]
        %v969 = vld [vmem:[%s247 + $0x70] sm:$0xff]
        %v970 = vld [vmem:[%s247 + $0x78] sm:$0xff]
        %v971 = vld [vmem:[#allocation3] sm:$0xff]
        %v972 = vld [vmem:[#allocation3 + $0x8] sm:$0xff]
        %v973 = vld [vmem:[#allocation3 + $0x10] sm:$0xff]
        %v974 = vld [vmem:[#allocation3 + $0x18] sm:$0xff]
        %v975 = vld [vmem:[#allocation3 + $0x20] sm:$0xff]
        %v976 = vld [vmem:[#allocation3 + $0x28] sm:$0xff]
        %v977 = vld [vmem:[#allocation3 + $0x30] sm:$0xff]
        %v978 = vld [vmem:[#allocation3 + $0x38] sm:$0xff]
        %v979 = vld [vmem:[#allocation3 + $0x40] sm:$0xff]
        %v980 = vld [vmem:[#allocation3 + $0x48] sm:$0xff]
        %v981 = vld [vmem:[#allocation3 + $0x50] sm:$0xff]
        %v982 = vld [vmem:[#allocation3 + $0x58] sm:$0xff]
        %v983 = vld [vmem:[#allocation3 + $0x60] sm:$0xff]
        %v984 = vld [vmem:[#allocation3 + $0x68] sm:$0xff]
        %v985 = vld [vmem:[#allocation3 + $0x70] sm:$0xff]
        %v986 = vld [vmem:[#allocation3 + $0x78] sm:$0xff]
        %v1003 = vunpack.c.l.b16 %v955
        %v1004 = vunpack.c.h.b16 %v955
        %v1005 = vunpack.c.l.b16 %v956
        %v1006 = vunpack.c.h.b16 %v956
        %v1007 = vunpack.c.l.b16 %v957
        %v1008 = vunpack.c.h.b16 %v957
        %v1009 = vunpack.c.l.b16 %v958
        %v1010 = vunpack.c.h.b16 %v958
        %v1011 = vunpack.c.l.b16 %v959
        %v1012 = vunpack.c.h.b16 %v959
        %v1013 = vunpack.c.l.b16 %v960
        %v1014 = vunpack.c.h.b16 %v960
        %v1015 = vunpack.c.l.b16 %v961
        %v1016 = vunpack.c.h.b16 %v961
        %v1017 = vunpack.c.l.b16 %v962
        %v1018 = vunpack.c.h.b16 %v962
        %v1019 = vunpack.c.l.b16 %v963
        %v1020 = vunpack.c.h.b16 %v963
        %v1021 = vunpack.c.l.b16 %v964
        %v1022 = vunpack.c.h.b16 %v964
        %v1023 = vunpack.c.l.b16 %v965
        %v1024 = vunpack.c.h.b16 %v965
        %v1025 = vunpack.c.l.b16 %v966
        %v1026 = vunpack.c.h.b16 %v966
        %v1027 = vunpack.c.l.b16 %v967
        %v1028 = vunpack.c.h.b16 %v967
        %v1029 = vunpack.c.l.b16 %v968
        %v1030 = vunpack.c.h.b16 %v968
        %v1031 = vunpack.c.l.b16 %v969
        %v1032 = vunpack.c.h.b16 %v969
        %v1033 = vunpack.c.l.b16 %v970
        %v1034 = vunpack.c.h.b16 %v970
        %v1035 = vpack.c.b16 %v1005, %v1003
        %v1036 = vpack.c.b16 %v1006, %v1004
        %v1037 = vpack.c.b16 %v1009, %v1007
        %v1038 = vpack.c.b16 %v1010, %v1008
        %v1039 = vpack.c.b16 %v1013, %v1011
        %v1040 = vpack.c.b16 %v1014, %v1012
        %v1041 = vpack.c.b16 %v1017, %v1015
        %v1042 = vpack.c.b16 %v1018, %v1016
        %v1043 = vpack.c.b16 %v1021, %v1019
        %v1044 = vpack.c.b16 %v1022, %v1020
        %v1045 = vpack.c.b16 %v1025, %v1023
        %v1046 = vpack.c.b16 %v1026, %v1024
        %v1047 = vpack.c.b16 %v1029, %v1027
        %v1048 = vpack.c.b16 %v1030, %v1028
        %v1049 = vpack.c.b16 %v1033, %v1031
        %v1050 = vpack.c.b16 %v1034, %v1032
        %1067 = vmatprep.subr.bf16.mxu0 0
        %1068 = vmatpush1.bf16.msra.mxu0 %v971
        %1069 = vmatprep.subr.bf16.mxu0 0
        %1070 = vmatpush1.bf16.msra.mxu0 %v972
        %1071 = vmatprep.subr.bf16.mxu0 0
        %1072 = vmatpush1.bf16.msra.mxu0 %v973
        %1073 = vmatprep.subr.bf16.mxu0 0
        %1074 = vmatpush1.bf16.msra.mxu0 %v974
        %1075 = vmatprep.subr.bf16.mxu0 0
        %1076 = vmatpush1.bf16.msra.mxu0 %v975
        %1077 = vmatprep.subr.bf16.mxu0 0
        %1078 = vmatpush1.bf16.msra.mxu0 %v976
        %1079 = vmatprep.subr.bf16.mxu0 0
        %1080 = vmatpush1.bf16.msra.mxu0 %v977
        %1081 = vmatprep.subr.bf16.mxu0 0
        %1082 = vmatpush1.bf16.msra.mxu0 %v978
        %1083 = vmatprep.subr.bf16.mxu0 0
        %1084 = vmatpush1.bf16.msra.mxu0 %v979
        %1085 = vmatprep.subr.bf16.mxu0 0
        %1086 = vmatpush1.bf16.msra.mxu0 %v980
        %1087 = vmatprep.subr.bf16.mxu0 0
        %1088 = vmatpush1.bf16.msra.mxu0 %v981
        %1089 = vmatprep.subr.bf16.mxu0 0
        %1090 = vmatpush1.bf16.msra.mxu0 %v982
        %1091 = vmatprep.subr.bf16.mxu0 0
        %1092 = vmatpush1.bf16.msra.mxu0 %v983
        %1093 = vmatprep.subr.bf16.mxu0 0
        %1094 = vmatpush1.bf16.msra.mxu0 %v984
        %1095 = vmatprep.subr.bf16.mxu0 0
        %1096 = vmatpush1.bf16.msra.mxu0 %v985
        %1097 = vmatprep.subr.bf16.mxu0 0
        %1098 = vmatpush1.bf16.msra.mxu0 %v986
        %1099 = vmatprep.mubr.bf16.mxu0 %v1036
        %1100 = vmatmul.mubr.bf16.gmra.mrb[0].mxu0 %v1035
        %v1101 = vpop.f32.mrb[0].mxu0
        %v1102 = vadd.f32 0.0, %v1101
        %v1103 = vpop.f32.mrb[0].mxu0
        %v1104 = vpop.f32.mrb[0].mxu0
        %v1105 = vadd.f32 0.0, %v1104
        %v1106 = vpop.f32.mrb[0].mxu0
        %1107 = vmatprep.mubr.bf16.mxu0 %v1038
        %1108 = vmatmul.mubr.bf16.gmra.mrb[0].mxu0 %v1037
        %v1109 = vpop.f32.mrb[0].mxu0
        %v1110 = vadd.f32 0.0, %v1109
        %v1111 = vpop.f32.mrb[0].mxu0
        %v1112 = vpop.f32.mrb[0].mxu0
        %v1113 = vadd.f32 0.0, %v1112
        %v1114 = vpop.f32.mrb[0].mxu0
        %1115 = vmatprep.mubr.bf16.mxu0 %v1040
        %1116 = vmatmul.mubr.bf16.gmra.mrb[0].mxu0 %v1039
        %v1117 = vpop.f32.mrb[0].mxu0
        %v1118 = vadd.f32 0.0, %v1117
        %v1119 = vpop.f32.mrb[0].mxu0
        %v1120 = vpop.f32.mrb[0].mxu0
        %v1121 = vadd.f32 0.0, %v1120
        %v1122 = vpop.f32.mrb[0].mxu0
        %1123 = vmatprep.mubr.bf16.mxu0 %v1042
        %1124 = vmatmul.mubr.bf16.gmra.mrb[0].mxu0 %v1041
        %v1125 = vpop.f32.mrb[0].mxu0
        %v1126 = vadd.f32 0.0, %v1125
        %v1127 = vpop.f32.mrb[0].mxu0
        %v1128 = vpop.f32.mrb[0].mxu0
        %v1129 = vadd.f32 0.0, %v1128
        %v1130 = vpop.f32.mrb[0].mxu0
        %1131 = vmatprep.mubr.bf16.mxu0 %v1044
        %1132 = vmatmul.mubr.bf16.gmra.mrb[0].mxu0 %v1043
        %v1133 = vpop.f32.mrb[0].mxu0
        %v1134 = vadd.f32 0.0, %v1133
        %v1135 = vpop.f32.mrb[0].mxu0
        %v1136 = vpop.f32.mrb[0].mxu0
        %v1137 = vadd.f32 0.0, %v1136
        %v1138 = vpop.f32.mrb[0].mxu0
        %1139 = vmatprep.mubr.bf16.mxu0 %v1046
        %1140 = vmatmul.mubr.bf16.gmra.mrb[0].mxu0 %v1045
        %v1141 = vpop.f32.mrb[0].mxu0
        %v1142 = vadd.f32 0.0, %v1141
        %v1143 = vpop.f32.mrb[0].mxu0
        %v1144 = vpop.f32.mrb[0].mxu0
        %v1145 = vadd.f32 0.0, %v1144
        %v1146 = vpop.f32.mrb[0].mxu0
        %1147 = vmatprep.mubr.bf16.mxu0 %v1048
        %1148 = vmatmul.mubr.bf16.gmra.mrb[0].mxu0 %v1047
        %v1149 = vpop.f32.mrb[0].mxu0
        %v1150 = vadd.f32 0.0, %v1149
        %v1151 = vpop.f32.mrb[0].mxu0
        %v1152 = vpop.f32.mrb[0].mxu0
        %v1153 = vadd.f32 0.0, %v1152
        %v1154 = vpop.f32.mrb[0].mxu0
        %1155 = vmatprep.mubr.bf16.mxu0 %v1050
        %1156 = vmatmul.mubr.bf16.gmra.mrb[0].mxu0 %v1049
        %v1157 = vpop.f32.mrb[0].mxu0
        %v1158 = vadd.f32 0.0, %v1157
        %v1159 = vpop.f32.mrb[0].mxu0
        %v1160 = vpop.f32.mrb[0].mxu0
        %v1161 = vadd.f32 0.0, %v1160
        %v1162 = vpop.f32.mrb[0].mxu0
        %1163 = vdwg.mxu0
        %v1164 = vld [vmem:[%s298] sm:$0x3]
        %v1165 = vlaneseq
        %v1166 = vshrl.u32 %v1165, 7
        %v1167 = vsub.s32 0, %v1166
        %v1168 = vrot.slane %v1164, %v1167
        %v1169 = vmul.f32 %v1102, %v1168
        %v1170 = vmul.f32 %v1105, %v1168
        %v1171 = vmul.f32 %v1110, %v1168
        %v1172 = vmul.f32 %v1113, %v1168
        %v1173 = vmul.f32 %v1118, %v1168
        %v1174 = vmul.f32 %v1121, %v1168
        %v1175 = vmul.f32 %v1126, %v1168
        %v1176 = vmul.f32 %v1129, %v1168
        %v1177 = vmul.f32 %v1134, %v1168
        %v1178 = vmul.f32 %v1137, %v1168
        %v1179 = vmul.f32 %v1142, %v1168
        %v1180 = vmul.f32 %v1145, %v1168
        %v1181 = vmul.f32 %v1150, %v1168
        %v1182 = vmul.f32 %v1153, %v1168
        %v1183 = vmul.f32 %v1158, %v1168
        %v1184 = vmul.f32 %v1161, %v1168
        %v1185 = vlaneseq
        %v1186 = vshrl.u32 %v1185, 7
        %v1187 = vsub.s32 1, %v1186
        %v1188 = vrot.slane %v1164, %v1187
        %v1189 = vadd.f32 %v1169, %v1188
        %v1190 = vadd.f32 %v1170, %v1188
        %v1191 = vadd.f32 %v1171, %v1188
        %v1192 = vadd.f32 %v1172, %v1188
        %v1193 = vadd.f32 %v1173, %v1188
        %v1194 = vadd.f32 %v1174, %v1188
        %v1195 = vadd.f32 %v1175, %v1188
        %v1196 = vadd.f32 %v1176, %v1188
        %v1197 = vadd.f32 %v1177, %v1188
        %v1198 = vadd.f32 %v1178, %v1188
        %v1199 = vadd.f32 %v1179, %v1188
        %v1200 = vadd.f32 %v1180, %v1188
        %v1201 = vadd.f32 %v1181, %v1188
        %v1202 = vadd.f32 %v1182, %v1188
        %v1203 = vadd.f32 %v1183, %v1188
        %v1204 = vadd.f32 %v1184, %v1188
        %p1205 = scmp.ne.s32.totalorder %s26, 2
        // Predicated region
        $region61: #{tpu_custom_call.1} parent=35 // pred_check
          %p1206 = pneg %p1205
        $region62: #{tpu_custom_call.1} parent=35 // pred_check_branch
          %1208 = sbr.rel (%p1206) target = $region64
        $region63: #{tpu_custom_call.1} parent=35 // pred_region
          %v1209 = vmax.f32 %v1189, 0.0
          %v1210 = vmax.f32 %v1190, 0.0
          %v1211 = vmax.f32 %v1191, 0.0
          %v1212 = vmax.f32 %v1192, 0.0
          %v1213 = vmax.f32 %v1193, 0.0
          %v1214 = vmax.f32 %v1194, 0.0
          %v1215 = vmax.f32 %v1195, 0.0
          %v1216 = vmax.f32 %v1196, 0.0
          %v1217 = vmax.f32 %v1197, 0.0
          %v1218 = vmax.f32 %v1198, 0.0
          %v1219 = vmax.f32 %v1199, 0.0
          %v1220 = vmax.f32 %v1200, 0.0
          %v1221 = vmax.f32 %v1201, 0.0
          %v1222 = vmax.f32 %v1202, 0.0
          %v1223 = vmax.f32 %v1203, 0.0
          %v1224 = vmax.f32 %v1204, 0.0
          %s1225 = smul.u32 %s27, 128
          %v1226 = vpack.c.bf16 %v1210, %v1209
          %v1227 = vpack.c.bf16 %v1212, %v1211
          %v1228 = vpack.c.bf16 %v1214, %v1213
          %v1229 = vpack.c.bf16 %v1216, %v1215
          %v1230 = vpack.c.bf16 %v1218, %v1217
          %v1231 = vpack.c.bf16 %v1220, %v1219
          %v1232 = vpack.c.bf16 %v1222, %v1221
          %v1233 = vpack.c.bf16 %v1224, %v1223
          %s1234 = sshra.s32 %s1225, 4
          %s1235 = sand.u32 %s1225, 15
          %s1236 = smul.addr %s1234, 8
          %s1237 = scalar_lea.vmem [#allocation2], %s1236
          %1238 = vst [vmem:[%s1237] sm:$0xff] %v1226
          %1239 = vst [vmem:[%s1237 + $0x8] sm:$0xff] %v1227
          %1240 = vst [vmem:[%s1237 + $0x10] sm:$0xff] %v1228
          %1241 = vst [vmem:[%s1237 + $0x18] sm:$0xff] %v1229
          %1242 = vst [vmem:[%s1237 + $0x20] sm:$0xff] %v1230
          %1243 = vst [vmem:[%s1237 + $0x28] sm:$0xff] %v1231
          %1244 = vst [vmem:[%s1237 + $0x30] sm:$0xff] %v1232
          %1245 = vst [vmem:[%s1237 + $0x38] sm:$0xff] %v1233
          %1246 = vst [vmem:[%s293] sm:$0xff] %v1209
          %1247 = vst [vmem:[%s293 + $0x8] sm:$0xff] %v1210
          %1248 = vst [vmem:[%s293 + $0x10] sm:$0xff] %v1211
          %1249 = vst [vmem:[%s293 + $0x18] sm:$0xff] %v1212
          %1250 = vst [vmem:[%s293 + $0x20] sm:$0xff] %v1213
          %1251 = vst [vmem:[%s293 + $0x28] sm:$0xff] %v1214
          %1252 = vst [vmem:[%s293 + $0x30] sm:$0xff] %v1215
          %1253 = vst [vmem:[%s293 + $0x38] sm:$0xff] %v1216
          %1254 = vst [vmem:[%s293 + $0x40] sm:$0xff] %v1217
          %1255 = vst [vmem:[%s293 + $0x48] sm:$0xff] %v1218
          %1256 = vst [vmem:[%s293 + $0x50] sm:$0xff] %v1219
          %1257 = vst [vmem:[%s293 + $0x58] sm:$0xff] %v1220
          %1258 = vst [vmem:[%s293 + $0x60] sm:$0xff] %v1221
          %1259 = vst [vmem:[%s293 + $0x68] sm:$0xff] %v1222
          %1260 = vst [vmem:[%s293 + $0x70] sm:$0xff] %v1223
          %1261 = vst [vmem:[%s293 + $0x78] sm:$0xff] %v1224
        $region64: #{tpu_custom_call.1} parent=35 // pred_fallthru
          _
        %p1262 = scmp.eq.s32.totalorder %s26, 2
        // Predicated region
        $region65: #{tpu_custom_call.1} parent=35 // pred_check
          %p1263 = pneg %p1262
        $region66: #{tpu_custom_call.1} parent=35 // pred_check_branch
          %1265 = sbr.rel (%p1263) target = $region68
        $region67: #{tpu_custom_call.1} parent=35 // pred_region
          %v1266 = vlaneseq
          %v1267 = vand.u32 %v1266, 127
          %vm1268 = vcmp.lt.s32.totalorder %v1267, 8
          %v1269 = vsel %vm1268, %v1189, -1e+30
          %v1270 = vsel %vm1268, %v1190, -1e+30
          %v1271 = vsel %vm1268, %v1191, -1e+30
          %v1272 = vsel %vm1268, %v1192, -1e+30
          %v1273 = vsel %vm1268, %v1193, -1e+30
          %v1274 = vsel %vm1268, %v1194, -1e+30
          %v1275 = vsel %vm1268, %v1195, -1e+30
          %v1276 = vsel %vm1268, %v1196, -1e+30
          %v1277 = vsel %vm1268, %v1197, -1e+30
          %v1278 = vsel %vm1268, %v1198, -1e+30
          %v1279 = vsel %vm1268, %v1199, -1e+30
          %v1280 = vsel %vm1268, %v1200, -1e+30
          %v1281 = vsel %vm1268, %v1201, -1e+30
          %v1282 = vsel %vm1268, %v1202, -1e+30
          %v1283 = vsel %vm1268, %v1203, -1e+30
          %v1284 = vsel %vm1268, %v1204, -1e+30
          %1285 = vmax.xlane.f32.xlu0 %v1269
          %v1286 = vpop.xlane.xlu0 %1285
          %1287 = vmax.xlane.f32.xlu0 %v1270
          %v1288 = vpop.xlane.xlu0 %1287
          %1289 = vmax.xlane.f32.xlu0 %v1271
          %v1290 = vpop.xlane.xlu0 %1289
          %1291 = vmax.xlane.f32.xlu0 %v1272
          %v1292 = vpop.xlane.xlu0 %1291
          %1293 = vmax.xlane.f32.xlu0 %v1273
          %v1294 = vpop.xlane.xlu0 %1293
          %1295 = vmax.xlane.f32.xlu0 %v1274
          %v1296 = vpop.xlane.xlu0 %1295
          %1297 = vmax.xlane.f32.xlu0 %v1275
          %v1298 = vpop.xlane.xlu0 %1297
          %1299 = vmax.xlane.f32.xlu0 %v1276
          %v1300 = vpop.xlane.xlu0 %1299
          %1301 = vmax.xlane.f32.xlu0 %v1277
          %v1302 = vpop.xlane.xlu0 %1301
          %1303 = vmax.xlane.f32.xlu0 %v1278
          %v1304 = vpop.xlane.xlu0 %1303
          %1305 = vmax.xlane.f32.xlu0 %v1279
          %v1306 = vpop.xlane.xlu0 %1305
          %1307 = vmax.xlane.f32.xlu0 %v1280
          %v1308 = vpop.xlane.xlu0 %1307
          %1309 = vmax.xlane.f32.xlu0 %v1281
          %v1310 = vpop.xlane.xlu0 %1309
          %1311 = vmax.xlane.f32.xlu0 %v1282
          %v1312 = vpop.xlane.xlu0 %1311
          %1313 = vmax.xlane.f32.xlu0 %v1283
          %v1314 = vpop.xlane.xlu0 %1313
          %1315 = vmax.xlane.f32.xlu0 %v1284
          %v1316 = vpop.xlane.xlu0 %1315
          %v1317 = vsub.f32 %v1269, %v1286
          %v1318 = vsub.f32 %v1270, %v1288
          %v1319 = vsub.f32 %v1271, %v1290
          %v1320 = vsub.f32 %v1272, %v1292
          %v1321 = vsub.f32 %v1273, %v1294
          %v1322 = vsub.f32 %v1274, %v1296
          %v1323 = vsub.f32 %v1275, %v1298
          %v1324 = vsub.f32 %v1276, %v1300
          %v1325 = vsub.f32 %v1277, %v1302
          %v1326 = vsub.f32 %v1278, %v1304
          %v1327 = vsub.f32 %v1279, %v1306
          %v1328 = vsub.f32 %v1280, %v1308
          %v1329 = vsub.f32 %v1281, %v1310
          %v1330 = vsub.f32 %v1282, %v1312
          %v1331 = vsub.f32 %v1283, %v1314
          %v1332 = vsub.f32 %v1284, %v1316
          %v1333 = vmul.f32 %v1317, 1.442695
          %v1334 = vpow.pop %v1333
          %v1335 = vmul.f32 %v1318, 1.442695
          %v1336 = vpow.pop %v1335
          %v1337 = vmul.f32 %v1319, 1.442695
          %v1338 = vpow.pop %v1337
          %v1339 = vmul.f32 %v1320, 1.442695
          %v1340 = vpow.pop %v1339
          %v1341 = vmul.f32 %v1321, 1.442695
          %v1342 = vpow.pop %v1341
          %v1343 = vmul.f32 %v1322, 1.442695
          %v1344 = vpow.pop %v1343
          %v1345 = vmul.f32 %v1323, 1.442695
          %v1346 = vpow.pop %v1345
          %v1347 = vmul.f32 %v1324, 1.442695
          %v1348 = vpow.pop %v1347
          %v1349 = vmul.f32 %v1325, 1.442695
          %v1350 = vpow.pop %v1349
          %v1351 = vmul.f32 %v1326, 1.442695
          %v1352 = vpow.pop %v1351
          %v1353 = vmul.f32 %v1327, 1.442695
          %v1354 = vpow.pop %v1353
          %v1355 = vmul.f32 %v1328, 1.442695
          %v1356 = vpow.pop %v1355
          %v1357 = vmul.f32 %v1329, 1.442695
          %v1358 = vpow.pop %v1357
          %v1359 = vmul.f32 %v1330, 1.442695
          %v1360 = vpow.pop %v1359
          %v1361 = vmul.f32 %v1331, 1.442695
          %v1362 = vpow.pop %v1361
          %v1363 = vmul.f32 %v1332, 1.442695
          %v1364 = vpow.pop %v1363
          %1365 = vadd.xlane.f32.xlu0 %v1334
          %v1366 = vpop.xlane.xlu0 %1365
          %1367 = vadd.xlane.f32.xlu0 %v1336
          %v1368 = vpop.xlane.xlu0 %1367
          %1369 = vadd.xlane.f32.xlu0 %v1338
          %v1370 = vpop.xlane.xlu0 %1369
          %1371 = vadd.xlane.f32.xlu0 %v1340
          %v1372 = vpop.xlane.xlu0 %1371
          %1373 = vadd.xlane.f32.xlu0 %v1342
          %v1374 = vpop.xlane.xlu0 %1373
          %1375 = vadd.xlane.f32.xlu0 %v1344
          %v1376 = vpop.xlane.xlu0 %1375
          %1377 = vadd.xlane.f32.xlu0 %v1346
          %v1378 = vpop.xlane.xlu0 %1377
          %1379 = vadd.xlane.f32.xlu0 %v1348
          %v1380 = vpop.xlane.xlu0 %1379
          %1381 = vadd.xlane.f32.xlu0 %v1350
          %v1382 = vpop.xlane.xlu0 %1381
          %1383 = vadd.xlane.f32.xlu0 %v1352
          %v1384 = vpop.xlane.xlu0 %1383
          %1385 = vadd.xlane.f32.xlu0 %v1354
          %v1386 = vpop.xlane.xlu0 %1385
          %1387 = vadd.xlane.f32.xlu0 %v1356
          %v1388 = vpop.xlane.xlu0 %1387
          %1389 = vadd.xlane.f32.xlu0 %v1358
          %v1390 = vpop.xlane.xlu0 %1389
          %1391 = vadd.xlane.f32.xlu0 %v1360
          %v1392 = vpop.xlane.xlu0 %1391
          %1393 = vadd.xlane.f32.xlu0 %v1362
          %v1394 = vpop.xlane.xlu0 %1393
          %1395 = vadd.xlane.f32.xlu0 %v1364
          %v1396 = vpop.xlane.xlu0 %1395
          %v1397 = vlog2.pop %v1366
          %v1398 = vmul.f32 %v1397, 0.6931472
          %v1399 = vlog2.pop %v1368
          %v1400 = vmul.f32 %v1399, 0.6931472
          %v1401 = vlog2.pop %v1370
          %v1402 = vmul.f32 %v1401, 0.6931472
          %v1403 = vlog2.pop %v1372
          %v1404 = vmul.f32 %v1403, 0.6931472
          %v1405 = vlog2.pop %v1374
          %v1406 = vmul.f32 %v1405, 0.6931472
          %v1407 = vlog2.pop %v1376
          %v1408 = vmul.f32 %v1407, 0.6931472
          %v1409 = vlog2.pop %v1378
          %v1410 = vmul.f32 %v1409, 0.6931472
          %v1411 = vlog2.pop %v1380
          %v1412 = vmul.f32 %v1411, 0.6931472
          %v1413 = vlog2.pop %v1382
          %v1414 = vmul.f32 %v1413, 0.6931472
          %v1415 = vlog2.pop %v1384
          %v1416 = vmul.f32 %v1415, 0.6931472
          %v1417 = vlog2.pop %v1386
          %v1418 = vmul.f32 %v1417, 0.6931472
          %v1419 = vlog2.pop %v1388
          %v1420 = vmul.f32 %v1419, 0.6931472
          %v1421 = vlog2.pop %v1390
          %v1422 = vmul.f32 %v1421, 0.6931472
          %v1423 = vlog2.pop %v1392
          %v1424 = vmul.f32 %v1423, 0.6931472
          %v1425 = vlog2.pop %v1394
          %v1426 = vmul.f32 %v1425, 0.6931472
          %v1427 = vlog2.pop %v1396
          %v1428 = vmul.f32 %v1427, 0.6931472
          %v1429 = vsub.f32 %v1317, %v1398
          %v1430 = vsub.f32 %v1318, %v1400
          %v1431 = vsub.f32 %v1319, %v1402
          %v1432 = vsub.f32 %v1320, %v1404
          %v1433 = vsub.f32 %v1321, %v1406
          %v1434 = vsub.f32 %v1322, %v1408
          %v1435 = vsub.f32 %v1323, %v1410
          %v1436 = vsub.f32 %v1324, %v1412
          %v1437 = vsub.f32 %v1325, %v1414
          %v1438 = vsub.f32 %v1326, %v1416
          %v1439 = vsub.f32 %v1327, %v1418
          %v1440 = vsub.f32 %v1328, %v1420
          %v1441 = vsub.f32 %v1329, %v1422
          %v1442 = vsub.f32 %v1330, %v1424
          %v1443 = vsub.f32 %v1331, %v1426
          %v1444 = vsub.f32 %v1332, %v1428
          %1445 = vst [vmem:[%s293] sm:$0xff] %v1429
          %1446 = vst [vmem:[%s293 + $0x8] sm:$0xff] %v1430
          %1447 = vst [vmem:[%s293 + $0x10] sm:$0xff] %v1431
          %1448 = vst [vmem:[%s293 + $0x18] sm:$0xff] %v1432
          %1449 = vst [vmem:[%s293 + $0x20] sm:$0xff] %v1433
          %1450 = vst [vmem:[%s293 + $0x28] sm:$0xff] %v1434
          %1451 = vst [vmem:[%s293 + $0x30] sm:$0xff] %v1435
          %1452 = vst [vmem:[%s293 + $0x38] sm:$0xff] %v1436
          %1453 = vst [vmem:[%s293 + $0x40] sm:$0xff] %v1437
          %1454 = vst [vmem:[%s293 + $0x48] sm:$0xff] %v1438
          %1455 = vst [vmem:[%s293 + $0x50] sm:$0xff] %v1439
          %1456 = vst [vmem:[%s293 + $0x58] sm:$0xff] %v1440
          %1457 = vst [vmem:[%s293 + $0x60] sm:$0xff] %v1441
          %1458 = vst [vmem:[%s293 + $0x68] sm:$0xff] %v1442
          %1459 = vst [vmem:[%s293 + $0x70] sm:$0xff] %v1443
          %1460 = vst [vmem:[%s293 + $0x78] sm:$0xff] %v1444
        $region68: #{tpu_custom_call.1} parent=35 // pred_fallthru
          _
        %s1461 = sand.u32 %s141, 1
        %s1462 = scalar_lea.sflag [#allocation6], %s1461
        %s1463 = sand.u32 %s141, 1
        %s1464 = smul.addr %s1463, 128
        %s1465 = scalar_lea.vmem [#allocation10], %s1464
        // Predicated region
        $region69: #{tpu_custom_call.1} parent=35 // pred_check
          %p1466 = pneg %p151
        $region70: #{tpu_custom_call.1} parent=35 // pred_check_branch
          %1468 = sbr.rel (%p1466) target = $region72
        $region71: #{tpu_custom_call.1} parent=35 // pred_region
          %s1469 = smul.u32 16, %s27
          %s1471 = ssub.s32 2048, 2048
          %1472 = vsyncadd %s1462, %s1471
          %s1473 = smul.addr %s1469, 128
          %s1474 = scalar_lea.hbm %s4, %s1473
          %s1475 = sshll.u32 %s1465, 4
          %s1476 = int_to_ptr.vmem [resolvable:$true] %s1475
          %1481 = dma.vmem_to_hbm [thread:$0]  %s1476, 2048, %s1474, %s1462, 128, 128, 8
        $region72: #{tpu_custom_call.1} parent=35 // pred_fallthru
          _
      $region36: #{tpu_custom_call.1} parent=5 // pred_fallthru
        _
      %p1482 = scmp.le.s32.totalorder 2, %s17
      // Predicated region
      $region73: #{tpu_custom_call.1} parent=5 // pred_check
        %p1483 = pneg %p1482
      $region74: #{tpu_custom_call.1} parent=5 // pred_check_branch
        %1485 = sbr.rel (%p1483) target = $region76
      $region75: #{tpu_custom_call.1} parent=5 // pred_region
        %s1486 = ssub.s32 %s17, 2
        // Predicated region
        $region77: #{tpu_custom_call.1} parent=75 // pred_check
          %p1487 = pneg %p157
        $region78: #{tpu_custom_call.1} parent=75 // pred_check_branch
          %1489 = sbr.rel (%p1487) target = $region80
        $region79: #{tpu_custom_call.1} parent=75 // pred_region
          %s1490 = sand.u32 %s142, 1
          %s1491 = scalar_lea.sflag [#allocation6], %s1490
          %s1492 = sand.u32 %s142, 1
          %s1493 = smul.addr %s1492, 128
          %s1494 = scalar_lea.vmem [#allocation10], %s1493
          %1495 = dma.done %s1491, 2048
        $region80: #{tpu_custom_call.1} parent=75 // pred_fallthru
          _
      $region76: #{tpu_custom_call.1} parent=5 // pred_fallthru
        _
    $region6: #{tpu_custom_call.1} parent=1 // loop_footer
      %s21 = sadd.s32 1, %s17
    $region7: #{tpu_custom_call.1} parent=1 // loop_footer_branch
      %16 = sbr.rel target = $region3
    $region8: #{tpu_custom_call.1} parent=1 // loop_exit
      _
    %1496 = vsyncpa [#allocation5], 1
    %s1497 = scalar_lea.sflag [#allocation5], 1
    %1498 = vsyncpa %s1497, 1
    %1499 = vsyncpa [#allocation8], 1
    %1500 = vsyncpa [#allocation6], 1
    %s1501 = scalar_lea.sflag [#allocation6], 1
    %1502 = vsyncpa %s1501, 1

</llo_original>
